<compile_context>
chip_gen: v7x
topology: tpu7x:2x2x1
jax: 0.10.0
libtpu: 0.0.40
codegen_flags: <defaults>
</compile_context>

<pallas_src>
import math
import functools

import jax
import jax.numpy as jnp
from jax.experimental import pallas as pl
from jax.experimental.pallas import tpu as pltpu

_VMEM_LIMIT = 32 * 1024 * 1024  # safe on v5e/v6e/v7x


# ----------------------------------------------------------------------------
# In-kernel helpers (operate on values, not refs)
# ----------------------------------------------------------------------------
def _ln(x, g, b, eps):
    mu = jnp.mean(x, axis=-1, keepdims=True)
    var = jnp.mean(jnp.square(x - mu), axis=-1, keepdims=True)
    return (x - mu) * jax.lax.rsqrt(var + eps) * g + b


def _gelu(x):
    # exact GELU (erf), matching torch.nn.GELU default
    return 0.5 * x * (1.0 + jax.lax.erf(x * (1.0 / math.sqrt(2.0))))


# ----------------------------------------------------------------------------
# Kernels
# ----------------------------------------------------------------------------
def _embed_kernel(pe_ref, w_ref, b_ref, cls_ref, pos_ref, o_ref):
    """Fused patch-embed linear + cls token + positional embedding (per batch).

    pe_ref: (1, T, CPP) with row 0 all-zeros (placeholder for the cls slot).
    """
    pe = pe_ref[0]                                              # (T, CPP) f32
    emb = jnp.dot(pe.astype(jnp.bfloat16), w_ref[...],
                  preferred_element_type=jnp.float32) + b_ref[...]   # (T, D)
    row = jax.lax.broadcasted_iota(jnp.int32, emb.shape, 0)
    tokens = jnp.where(row == 0, cls_ref[...], emb) + pos_ref[...]
    # TODO(synk): em_dropout is identity (inference mode).
    o_ref[0] = tokens


def _encoder_layer_kernel(h_ref, ln1g_ref, ln1b_ref, wqkv_ref, bqkv_ref,
                          wo_ref, bo_ref, ln2g_ref, ln2b_ref,
                          w1_ref, b1_ref, w2_ref, b2_ref,
                          out_ref, attn_ref, *, num_heads, eps):
    """One full pre-LN transformer encoder block for one batch element."""
    h = h_ref[0]                                                # (T, D) f32
    T, D = h.shape
    dh = D // num_heads
    scale = 1.0 / math.sqrt(dh)

    # --- LN1 + fused QKV projection ---
    xn = _ln(h, ln1g_ref[...], ln1b_ref[...], eps)
    qkv = jnp.dot(xn.astype(jnp.bfloat16), wqkv_ref[...],
                  preferred_element_type=jnp.float32) + bqkv_ref[...]  # (T, 3D)

    # --- Multi-head self attention (heads unrolled; output proj folded in) ---
    wo = wo_ref[...]                                            # (D, D) bf16
    attn_out = jnp.zeros((T, D), jnp.float32)
    p_sum = jnp.zeros((T, T), jnp.float32)
    for hd in range(num_heads):
        q = qkv[:, hd * dh:(hd + 1) * dh]
        k = qkv[:, D + hd * dh:D + (hd + 1) * dh]
        v = qkv[:, 2 * D + hd * dh:2 * D + (hd + 1) * dh]
        # QK^T without materializing a transpose of K.
        s = jax.lax.dot_general(
            q.astype(jnp.bfloat16), k.astype(jnp.bfloat16),
            (((1,), (1,)), ((), ())),
            preferred_element_type=jnp.float32) * scale          # (T, T)
        s = s - jnp.max(s, axis=-1, keepdims=True)
        e = jnp.exp(s)
        p = e * pl.reciprocal(jnp.sum(e, axis=-1, keepdims=True), approx=True)
        # TODO(synk): atten_dropout is identity (inference mode).
        p_sum = p_sum + p
        o_h = jnp.dot(p.astype(jnp.bfloat16), v.astype(jnp.bfloat16),
                      preferred_element_type=jnp.float32)        # (T, dh)
        attn_out = attn_out + jnp.dot(
            o_h.astype(jnp.bfloat16), wo[hd * dh:(hd + 1) * dh, :],
            preferred_element_type=jnp.float32)                  # (T, D)

    # Head-averaged attention weights (torch MHA default contract).
    attn_ref[0] = p_sum * (1.0 / num_heads)

    h1 = h + attn_out + bo_ref[...]

    # --- LN2 + MLP ---
    x2 = _ln(h1, ln2g_ref[...], ln2b_ref[...], eps)
    m = jnp.dot(x2.astype(jnp.bfloat16), w1_ref[...],
                preferred_element_type=jnp.float32) + b1_ref[...]
    m = _gelu(m)
    # TODO(synk): mlp_dropout is identity (inference mode).
    m2 = jnp.dot(m.astype(jnp.bfloat16), w2_ref[...],
                 preferred_element_type=jnp.float32) + b2_ref[...]
    out_ref[0] = h1 + m2


def _final_head_kernel(cls_ref, g_ref, b_ref, w_ref, hb_ref, o_ref, *, eps):
    """Fused final LayerNorm (on CLS tokens only) + ViT head linear."""
    x = cls_ref[...]                                            # (B, D) f32
    xn = _ln(x, g_ref[...], b_ref[...], eps)
    o_ref[...] = jnp.dot(xn.astype(jnp.bfloat16), w_ref[...],
                         preferred_element_type=jnp.float32) + hb_ref[...]


# ----------------------------------------------------------------------------
# pallas_call wrappers
# ----------------------------------------------------------------------------
def patch_embed(patches_ext, fp, *, T):
    B, T_in, CPP = patches_ext.shape
    assert T_in == T
    D = fp["pos"].shape[1]
    const = lambda b: (0, 0)
    return pl.pallas_call(
        _embed_kernel,
        out_shape=jax.ShapeDtypeStruct((B, T, D), jnp.float32),
        grid=(B,),
        in_specs=[
            pl.BlockSpec((1, T, CPP), lambda b: (b, 0, 0)),
            pl.BlockSpec((CPP, D), const),
            pl.BlockSpec((1, D), const),
            pl.BlockSpec((1, D), const),   # cls
            pl.BlockSpec((T, D), const),   # pos
        ],
        out_specs=pl.BlockSpec((1, T, D), lambda b: (b, 0, 0)),
        compiler_params=pltpu.CompilerParams(
            dimension_semantics=("parallel",),
            vmem_limit_bytes=_VMEM_LIMIT),
    )(patches_ext, fp["patch_w"], fp["patch_b"], fp["cls"], fp["pos"])


def encoder_layer(h, lp, *, num_heads):
    B, T, D = h.shape
    Dm = lp["w1"].shape[1]
    const = lambda b: (0, 0)
    kernel = functools.partial(_encoder_layer_kernel,
                               num_heads=num_heads, eps=1e-5)
    return pl.pallas_call(
        kernel,
        out_shape=(jax.ShapeDtypeStruct((B, T, D), jnp.float32),
                   jax.ShapeDtypeStruct((B, T, T), jnp.float32)),
        grid=(B,),
        in_specs=[
            pl.BlockSpec((1, T, D), lambda b: (b, 0, 0)),  # h
            pl.BlockSpec((1, D), const),                   # ln1_g
            pl.BlockSpec((1, D), const),                   # ln1_b
            pl.BlockSpec((D, 3 * D), const),               # wqkv
            pl.BlockSpec((1, 3 * D), const),               # bqkv
            pl.BlockSpec((D, D), const),                   # wo
            pl.BlockSpec((1, D), const),                   # bo
            pl.BlockSpec((1, D), const),                   # ln2_g
            pl.BlockSpec((1, D), const),                   # ln2_b
            pl.BlockSpec((D, Dm), const),                  # w1
            pl.BlockSpec((1, Dm), const),                  # b1
            pl.BlockSpec((Dm, D), const),                  # w2
            pl.BlockSpec((1, D), const),                   # b2
        ],
        out_specs=(pl.BlockSpec((1, T, D), lambda b: (b, 0, 0)),
                   pl.BlockSpec((1, T, T), lambda b: (b, 0, 0))),
        compiler_params=pltpu.CompilerParams(
            dimension_semantics=("parallel",),
            vmem_limit_bytes=_VMEM_LIMIT),
    )(h, lp["ln1_g"], lp["ln1_b"], lp["wqkv"], lp["bqkv"], lp["wo"], lp["bo"],
      lp["ln2_g"], lp["ln2_b"], lp["w1"], lp["b1"], lp["w2"], lp["b2"])


def final_head(cls_tok, fp, *, num_classes):
    B, D = cls_tok.shape
    Np = fp["head_w"].shape[1]
    out = pl.pallas_call(
        functools.partial(_final_head_kernel, eps=1e-5),
        out_shape=jax.ShapeDtypeStruct((B, Np), jnp.float32),
        in_specs=[
            pl.BlockSpec((B, D), lambda: (0, 0)),
            pl.BlockSpec((1, D), lambda: (0, 0)),
            pl.BlockSpec((1, D), lambda: (0, 0)),
            pl.BlockSpec((D, Np), lambda: (0, 0)),
            pl.BlockSpec((1, Np), lambda: (0, 0)),
        ],
        out_specs=pl.BlockSpec((B, Np), lambda: (0, 0)),
        compiler_params=pltpu.CompilerParams(vmem_limit_bytes=_VMEM_LIMIT),
    )(cls_tok, fp["lnf_g"], fp["lnf_b"], fp["head_w"], fp["head_b"])
    return out[:, :num_classes]


# ----------------------------------------------------------------------------
# Parameter init (deterministic, synthetic) + fusion/packing prep
# ----------------------------------------------------------------------------
def init_params(key, *, channels, patch, dim, mlp, layers, num_heads,
                image_hw, num_classes):
    ih, iw = image_hw
    n_patches = (ih // patch) * (iw // patch)
    seq = n_patches + 1
    std = 0.02

    keys = jax.random.split(key, 3 + layers)
    params = {
        "patch_w": jax.random.normal(keys[0], (channels * patch * patch, dim),
                                     jnp.float32) * std,
        "patch_b": jnp.zeros((dim,), jnp.float32),
        "cls": jax.random.normal(keys[1], (1, 1, dim), jnp.float32) * std,
        "pos": jax.random.normal(keys[2], (1, seq, dim), jnp.float32) * std,
        "lnf_g": jnp.ones((dim,), jnp.float32),
        "lnf_b": jnp.zeros((dim,), jnp.float32),
        # vit_head: nn.init.zeros_ on weight and bias (as in the module)
        "head_w": jnp.zeros((dim, num_classes), jnp.float32),
        "head_b": jnp.zeros((num_classes,), jnp.float32),
        "layers": [],
    }
    for li in range(layers):
        lk = jax.random.split(keys[3 + li], 6)
        params["layers"].append({
            "ln1_g": jnp.ones((dim,), jnp.float32),
            "ln1_b": jnp.zeros((dim,), jnp.float32),
            "wq": jax.random.normal(lk[0], (dim, dim), jnp.float32) * std,
            "bq": jnp.zeros((dim,), jnp.float32),
            "wk": jax.random.normal(lk[1], (dim, dim), jnp.float32) * std,
            "bk": jnp.zeros((dim,), jnp.float32),
            "wv": jax.random.normal(lk[2], (dim, dim), jnp.float32) * std,
            "bv": jnp.zeros((dim,), jnp.float32),
            "wo": jax.random.normal(lk[3], (dim, dim), jnp.float32) * std,
            "bo": jnp.zeros((dim,), jnp.float32),
            "ln2_g": jnp.ones((dim,), jnp.float32),
            "ln2_b": jnp.zeros((dim,), jnp.float32),
            "w1": jax.random.normal(lk[4], (dim, mlp), jnp.float32) * std,
            "b1": jnp.zeros((mlp,), jnp.float32),
            "w2": jax.random.normal(lk[5], (mlp, dim), jnp.float32) * std,
            "b2": jnp.zeros((dim,), jnp.float32),
        })
    return params


def prepare_params(params, *, num_classes):
    """Fuse QKV weights, pad the head to a 128-lane output, cast matmul
    weights to bf16 (fp32 accumulation happens inside the kernels)."""
    D = params["patch_w"].shape[1]
    Np = ((num_classes + 127) // 128) * 128
    head_w = jnp.zeros((D, Np), jnp.float32).at[:, :num_classes].set(
        params["head_w"])
    head_b = jnp.zeros((Np,), jnp.float32).at[:num_classes].set(
        params["head_b"])

    fp = {
        "patch_w": params["patch_w"].astype(jnp.bfloat16),
        "patch_b": params["patch_b"].reshape(1, -1),
        "cls": params["cls"].reshape(1, D),
        "pos": params["pos"].reshape(-1, D),
        "lnf_g": params["lnf_g"].reshape(1, -1),
        "lnf_b": params["lnf_b"].reshape(1, -1),
        "head_w": head_w.astype(jnp.bfloat16),
        "head_b": head_b.reshape(1, -1),
        "layers": [],
    }
    for lp in params["layers"]:
        wqkv = jnp.concatenate([lp["wq"], lp["wk"], lp["wv"]], axis=1)
        bqkv = jnp.concatenate([lp["bq"], lp["bk"], lp["bv"]], axis=0)
        fp["layers"].append({
            "ln1_g": lp["ln1_g"].reshape(1, -1),
            "ln1_b": lp["ln1_b"].reshape(1, -1),
            "wqkv": wqkv.astype(jnp.bfloat16),
            "bqkv": bqkv.reshape(1, -1),
            "wo": lp["wo"].astype(jnp.bfloat16),
            "bo": lp["bo"].reshape(1, -1),
            "ln2_g": lp["ln2_g"].reshape(1, -1),
            "ln2_b": lp["ln2_b"].reshape(1, -1),
            "w1": lp["w1"].astype(jnp.bfloat16),
            "b1": lp["b1"].reshape(1, -1),
            "w2": lp["w2"].astype(jnp.bfloat16),
            "b2": lp["b2"].reshape(1, -1),
        })
    return fp


# ----------------------------------------------------------------------------
# Forward pass
# ----------------------------------------------------------------------------
def vit_forward(x, fp, *, num_heads, patch, num_classes):
    B, C, H, W = x.shape
    P = patch
    nh, nw = H // P, W // P
    n_patches = nh * nw
    T = n_patches + 1

    # Patchify NCHW exactly like Conv2d(kernel=P, stride=P): per-patch flatten
    # order is (C, P, P), matching the flattened conv weight (C*P*P, D).
    # TODO(synk): this patchify transpose runs in XLA; it could be folded into
    # the embed kernel with an Element-indexed gather BlockSpec for very large
    # images to avoid materializing the patch slab in HBM.
    patches = x.reshape(B, C, nh, P, nw, P).transpose(0, 2, 4, 1, 3, 5)
    patches = patches.reshape(B, n_patches, C * P * P)
    # Prepend an all-zero row per batch (placeholder for the CLS slot) so the
    # embed kernel emits a full lane-dense (T, D) token slab in one store.
    patches_ext = jnp.pad(patches, ((0, 0), (1, 0), (0, 0)))

    h = patch_embed(patches_ext, fp, T=T)

    attn_all = []
    for lp in fp["layers"]:
        h, p = encoder_layer(h, lp, num_heads=num_heads)
        attn_all.append(p)

    logits = final_head(h[:, 0, :], fp, num_classes=num_classes)
    # Attention weights are head-averaged (torch MHA default): (L, B, T, T).
    return logits, jnp.stack(attn_all)


# ----------------------------------------------------------------------------
if __name__ == "__main__":
    # Small ViT: heads=4, d_model=32, d_mlp=64, layers=2, image 16x16,
    # channels=4, patch=8 -> 4 patches + cls = 5 tokens, 10 classes.
    num_heads, dim_of_model, dim_of_mlp, num_layers = 4, 32, 64, 2
    image_hw, channels, patch_size, num_classes = (16, 16), 4, 8, 10
    B = 2

    key = jax.random.PRNGKey(0)
    pkey, xkey = jax.random.split(key)
    params = init_params(
        pkey, channels=channels, patch=patch_size, dim=dim_of_model,
        mlp=dim_of_mlp, layers=num_layers, num_heads=num_heads,
        image_hw=image_hw, num_classes=num_classes)
    fparams = prepare_params(params, num_classes=num_classes)

    x = jax.random.normal(xkey, (B, channels) + image_hw, jnp.float32)

    fwd = jax.jit(functools.partial(
        vit_forward, num_heads=num_heads, patch=patch_size,
        num_classes=num_classes))
    logits, attn = fwd(x, fparams)
    jax.block_until_ready((logits, attn))

    T = (image_hw[0] // patch_size) * (image_hw[1] // patch_size) + 1
    assert logits.shape == (B, num_classes)
    assert attn.shape == (num_layers, B, T, T)
    print("KERNEL_OK")
</pallas_src>

<mosaic_0001>
module attributes {stable_mosaic.version = 11 : i64} {
  func.func @_embed_kernel(%arg0: i32, %arg1: memref<1x5x256xf32, #tpu.memory_space<vmem>>, %arg2: memref<256x32xbf16, #tpu.memory_space<vmem>>, %arg3: memref<1x32xf32, #tpu.memory_space<vmem>>, %arg4: memref<1x32xf32, #tpu.memory_space<vmem>>, %arg5: memref<5x32xf32, #tpu.memory_space<vmem>>, %arg6: memref<1x5x32xf32, #tpu.memory_space<vmem>>) attributes {dimension_semantics = [#tpu.dimension_semantics<parallel>], iteration_bounds = array<i64: 2>, scalar_prefetch = 0 : i64, scratch_operands = 0 : i64, tpu.core_type = #tpu.core_type<tc>, window_params = [{transform_indices = @transform_0, window_bounds = array<i64: 1, 5, 256>}, {pipeline_mode = #tpu.pipeline_mode<synchronous>, transform_indices = @transform_1, window_bounds = array<i64: 256, 32>}, {pipeline_mode = #tpu.pipeline_mode<synchronous>, transform_indices = @transform_2, window_bounds = array<i64: 1, 32>}, {pipeline_mode = #tpu.pipeline_mode<synchronous>, transform_indices = @transform_3, window_bounds = array<i64: 1, 32>}, {pipeline_mode = #tpu.pipeline_mode<synchronous>, transform_indices = @transform_4, window_bounds = array<i64: 5, 32>}, {transform_indices = @transform_5, window_bounds = array<i64: 1, 5, 32>}]} {
    %c0 = arith.constant 0 : index
    %c0_0 = arith.constant 0 : index
    %c0_1 = arith.constant 0 : index
    %0 = vector.load %arg1[%c0, %c0_0, %c0_1] : memref<1x5x256xf32, #tpu.memory_space<vmem>>, vector<1x5x256xf32>
    %1 = vector.shape_cast %0 : vector<1x5x256xf32> to vector<5x256xf32>
    %2 = arith.truncf %1 : vector<5x256xf32> to vector<5x256xbf16>
    %c0_2 = arith.constant 0 : index
    %c0_3 = arith.constant 0 : index
    %3 = vector.load %arg2[%c0_2, %c0_3] : memref<256x32xbf16, #tpu.memory_space<vmem>>, vector<256x32xbf16>
    %cst = arith.constant dense<0.000000e+00> : vector<5x32xf32>
    %4 = tpu.matmul %2, %3, %cst {dimension_numbers = #tpu.dot_dimension_numbers<[1], [0], [0], [1], [0, 0, 1, 1], [], []>} : vector<5x256xbf16>, vector<256x32xbf16>, vector<5x32xf32> -> vector<5x32xf32>
    %c0_4 = arith.constant 0 : index
    %c0_5 = arith.constant 0 : index
    %5 = vector.load %arg3[%c0_4, %c0_5] : memref<1x32xf32, #tpu.memory_space<vmem>>, vector<1x32xf32>
    %6 = vector.broadcast %5 : vector<1x32xf32> to vector<5x32xf32>
    %7 = arith.addf %4, %6 : vector<5x32xf32>
    %8 = tpu.iota {dimensions = array<i32: 0>} : vector<5x32xi32>
    %c0_i32 = arith.constant 0 : i32
    %9 = vector.broadcast %c0_i32 : i32 to vector<5x32xi32>
    %10 = arith.cmpi eq, %8, %9 : vector<5x32xi32>
    %c0_6 = arith.constant 0 : index
    %c0_7 = arith.constant 0 : index
    %11 = vector.load %arg4[%c0_6, %c0_7] : memref<1x32xf32, #tpu.memory_space<vmem>>, vector<1x32xf32>
    %12 = vector.shape_cast %11 : vector<1x32xf32> to vector<1x32xf32>
    %13 = vector.broadcast %12 : vector<1x32xf32> to vector<5x32xf32>
    %14 = arith.select %10, %13, %7 : vector<5x32xi1>, vector<5x32xf32>
    %c0_8 = arith.constant 0 : index
    %c0_9 = arith.constant 0 : index
    %15 = vector.load %arg5[%c0_8, %c0_9] : memref<5x32xf32, #tpu.memory_space<vmem>>, vector<5x32xf32>
    %16 = arith.addf %14, %15 : vector<5x32xf32>
    %c0_10 = arith.constant 0 : index
    %c0_11 = arith.constant 0 : index
    %c0_12 = arith.constant 0 : index
    %17 = vector.load %arg6[%c0_10, %c0_11, %c0_12] : memref<1x5x32xf32, #tpu.memory_space<vmem>>, vector<1x5x32xf32>
    %18 = vector.shape_cast %17 : vector<1x5x32xf32> to vector<5x32xf32>
    %19 = vector.shape_cast %16 : vector<5x32xf32> to vector<1x5x32xf32>
    tpu.vector_store %arg6[%c0_10, %c0_11, %c0_12], %19 {strides = array<i32>} : memref<1x5x32xf32, #tpu.memory_space<vmem>>, vector<1x5x32xf32>,
    return
  }
  func.func @transform_0(%arg0: i32) -> (i32, i32, i32) {
    %c0_i32 = arith.constant 0 : i32
    %c0_i32_0 = arith.constant 0 : i32
    %c0_i32_1 = arith.constant 0 : i32
    return %arg0, %c0_i32, %c0_i32_0 : i32, i32, i32
  }
  func.func @transform_1(%arg0: i32) -> (i32, i32) {
    %c0_i32 = arith.constant 0 : i32
    %c0_i32_0 = arith.constant 0 : i32
    %c0_i32_1 = arith.constant 0 : i32
    return %c0_i32, %c0_i32_0 : i32, i32
  }
  func.func @transform_2(%arg0: i32) -> (i32, i32) {
    %c0_i32 = arith.constant 0 : i32
    %c0_i32_0 = arith.constant 0 : i32
    %c0_i32_1 = arith.constant 0 : i32
    return %c0_i32, %c0_i32_0 : i32, i32
  }
  func.func @transform_3(%arg0: i32) -> (i32, i32) {
    %c0_i32 = arith.constant 0 : i32
    %c0_i32_0 = arith.constant 0 : i32
    %c0_i32_1 = arith.constant 0 : i32
    return %c0_i32, %c0_i32_0 : i32, i32
  }
  func.func @transform_4(%arg0: i32) -> (i32, i32) {
    %c0_i32 = arith.constant 0 : i32
    %c0_i32_0 = arith.constant 0 : i32
    %c0_i32_1 = arith.constant 0 : i32
    return %c0_i32, %c0_i32_0 : i32, i32
  }
  func.func @transform_5(%arg0: i32) -> (i32, i32, i32) {
    %c0_i32 = arith.constant 0 : i32
    %c0_i32_0 = arith.constant 0 : i32
    %c0_i32_1 = arith.constant 0 : i32
    return %arg0, %c0_i32, %c0_i32_0 : i32, i32, i32
  }
}

module attributes {stable_mosaic.version = 11 : i64} {
  func.func @_encoder_layer_kernel(%arg0: i32, %arg1: memref<1x5x32xf32, #tpu.memory_space<vmem>>, %arg2: memref<1x32xf32, #tpu.memory_space<vmem>>, %arg3: memref<1x32xf32, #tpu.memory_space<vmem>>, %arg4: memref<32x96xbf16, #tpu.memory_space<vmem>>, %arg5: memref<1x96xf32, #tpu.memory_space<vmem>>, %arg6: memref<32x32xbf16, #tpu.memory_space<vmem>>, %arg7: memref<1x32xf32, #tpu.memory_space<vmem>>, %arg8: memref<1x32xf32, #tpu.memory_space<vmem>>, %arg9: memref<1x32xf32, #tpu.memory_space<vmem>>, %arg10: memref<32x64xbf16, #tpu.memory_space<vmem>>, %arg11: memref<1x64xf32, #tpu.memory_space<vmem>>, %arg12: memref<64x32xbf16, #tpu.memory_space<vmem>>, %arg13: memref<1x32xf32, #tpu.memory_space<vmem>>, %arg14: memref<1x5x32xf32, #tpu.memory_space<vmem>>, %arg15: memref<1x5x5xf32, #tpu.memory_space<vmem>>) attributes {dimension_semantics = [#tpu.dimension_semantics<parallel>], iteration_bounds = array<i64: 2>, scalar_prefetch = 0 : i64, scratch_operands = 0 : i64, tpu.core_type = #tpu.core_type<tc>, window_params = [{transform_indices = @transform_0, window_bounds = array<i64: 1, 5, 32>}, {pipeline_mode = #tpu.pipeline_mode<synchronous>, transform_indices = @transform_1, window_bounds = array<i64: 1, 32>}, {pipeline_mode = #tpu.pipeline_mode<synchronous>, transform_indices = @transform_2, window_bounds = array<i64: 1, 32>}, {pipeline_mode = #tpu.pipeline_mode<synchronous>, transform_indices = @transform_3, window_bounds = array<i64: 32, 96>}, {pipeline_mode = #tpu.pipeline_mode<synchronous>, transform_indices = @transform_4, window_bounds = array<i64: 1, 96>}, {pipeline_mode = #tpu.pipeline_mode<synchronous>, transform_indices = @transform_5, window_bounds = array<i64: 32, 32>}, {pipeline_mode = #tpu.pipeline_mode<synchronous>, transform_indices = @transform_6, window_bounds = array<i64: 1, 32>}, {pipeline_mode = #tpu.pipeline_mode<synchronous>, transform_indices = @transform_7, window_bounds = array<i64: 1, 32>}, {pipeline_mode = #tpu.pipeline_mode<synchronous>, transform_indices = @transform_8, window_bounds = array<i64: 1, 32>}, {pipeline_mode = #tpu.pipeline_mode<synchronous>, transform_indices = @transform_9, window_bounds = array<i64: 32, 64>}, {pipeline_mode = #tpu.pipeline_mode<synchronous>, transform_indices = @transform_10, window_bounds = array<i64: 1, 64>}, {pipeline_mode = #tpu.pipeline_mode<synchronous>, transform_indices = @transform_11, window_bounds = array<i64: 64, 32>}, {pipeline_mode = #tpu.pipeline_mode<synchronous>, transform_indices = @transform_12, window_bounds = array<i64: 1, 32>}, {transform_indices = @transform_13, window_bounds = array<i64: 1, 5, 32>}, {transform_indices = @transform_14, window_bounds = array<i64: 1, 5, 5>}]} {
    %c0 = arith.constant 0 : index
    %c0_0 = arith.constant 0 : index
    %c0_1 = arith.constant 0 : index
    %0 = vector.load %arg1[%c0, %c0_0, %c0_1] : memref<1x5x32xf32, #tpu.memory_space<vmem>>, vector<1x5x32xf32>
    %1 = vector.shape_cast %0 : vector<1x5x32xf32> to vector<5x32xf32>
    %c0_2 = arith.constant 0 : index
    %c0_3 = arith.constant 0 : index
    %2 = vector.load %arg2[%c0_2, %c0_3] : memref<1x32xf32, #tpu.memory_space<vmem>>, vector<1x32xf32>
    %c0_4 = arith.constant 0 : index
    %c0_5 = arith.constant 0 : index
    %3 = vector.load %arg3[%c0_4, %c0_5] : memref<1x32xf32, #tpu.memory_space<vmem>>, vector<1x32xf32>
    %cst = arith.constant dense<0.000000e+00> : vector<5xf32>
    %4 = vector.multi_reduction <add>, %1, %cst [1] : vector<5x32xf32> to vector<5xf32>
    %5 = vector.shape_cast %4 : vector<5xf32> to vector<5x1xf32>
    %cst_6 = arith.constant 3.200000e+01 : f32
    %6 = vector.broadcast %cst_6 : f32 to vector<5x1xf32>
    %7 = arith.divf %5, %6 : vector<5x1xf32>
    %8 = vector.broadcast %7 : vector<5x1xf32> to vector<5x32xf32>
    %9 = arith.subf %1, %8 : vector<5x32xf32>
    %10 = arith.mulf %9, %9 : vector<5x32xf32>
    %cst_7 = arith.constant dense<0.000000e+00> : vector<5xf32>
    %11 = vector.multi_reduction <add>, %10, %cst_7 [1] : vector<5x32xf32> to vector<5xf32>
    %12 = vector.shape_cast %11 : vector<5xf32> to vector<5x1xf32>
    %cst_8 = arith.constant 3.200000e+01 : f32
    %13 = vector.broadcast %cst_8 : f32 to vector<5x1xf32>
    %14 = arith.divf %12, %13 : vector<5x1xf32>
    %15 = vector.broadcast %7 : vector<5x1xf32> to vector<5x32xf32>
    %16 = arith.subf %1, %15 : vector<5x32xf32>
    %cst_9 = arith.constant 9.99999974E-6 : f32
    %17 = vector.broadcast %cst_9 : f32 to vector<5x1xf32>
    %18 = arith.addf %14, %17 : vector<5x1xf32>
    %19 = math.rsqrt %18 : vector<5x1xf32>
    %20 = vector.broadcast %19 : vector<5x1xf32> to vector<5x32xf32>
    %21 = arith.mulf %16, %20 : vector<5x32xf32>
    %22 = vector.broadcast %2 : vector<1x32xf32> to vector<5x32xf32>
    %23 = arith.mulf %21, %22 : vector<5x32xf32>
    %24 = vector.broadcast %3 : vector<1x32xf32> to vector<5x32xf32>
    %25 = arith.addf %23, %24 : vector<5x32xf32>
    %26 = arith.truncf %25 : vector<5x32xf32> to vector<5x32xbf16>
    %c0_10 = arith.constant 0 : index
    %c0_11 = arith.constant 0 : index
    %27 = vector.load %arg4[%c0_10, %c0_11] : memref<32x96xbf16, #tpu.memory_space<vmem>>, vector<32x96xbf16>
    %cst_12 = arith.constant dense<0.000000e+00> : vector<5x96xf32>
    %28 = tpu.matmul %26, %27, %cst_12 {dimension_numbers = #tpu.dot_dimension_numbers<[1], [0], [0], [1], [0, 0, 1, 1], [], []>} : vector<5x32xbf16>, vector<32x96xbf16>, vector<5x96xf32> -> vector<5x96xf32>
    %c0_13 = arith.constant 0 : index
    %c0_14 = arith.constant 0 : index
    %29 = vector.load %arg5[%c0_13, %c0_14] : memref<1x96xf32, #tpu.memory_space<vmem>>, vector<1x96xf32>
    %30 = vector.broadcast %29 : vector<1x96xf32> to vector<5x96xf32>
    %31 = arith.addf %28, %30 : vector<5x96xf32>
    %c0_15 = arith.constant 0 : index
    %c0_16 = arith.constant 0 : index
    %32 = vector.load %arg6[%c0_15, %c0_16] : memref<32x32xbf16, #tpu.memory_space<vmem>>, vector<32x32xbf16>
    %cst_17 = arith.constant 0.000000e+00 : f32
    %33 = vector.broadcast %cst_17 : f32 to vector<5x32xf32>
    %cst_18 = arith.constant 0.000000e+00 : f32
    %34 = vector.broadcast %cst_18 : f32 to vector<5x5xf32>
    %35 = vector.extract_strided_slice %31 {offsets = [0, 0], sizes = [5, 8], strides = [1, 1]} : vector<5x96xf32> to vector<5x8xf32>
    %36 = vector.extract_strided_slice %31 {offsets = [0, 32], sizes = [5, 8], strides = [1, 1]} : vector<5x96xf32> to vector<5x8xf32>
    %37 = vector.extract_strided_slice %31 {offsets = [0, 64], sizes = [5, 8], strides = [1, 1]} : vector<5x96xf32> to vector<5x8xf32>
    %38 = arith.truncf %35 : vector<5x8xf32> to vector<5x8xbf16>
    %39 = arith.truncf %36 : vector<5x8xf32> to vector<5x8xbf16>
    %cst_19 = arith.constant dense<0.000000e+00> : vector<5x5xf32>
    %40 = tpu.matmul %38, %39, %cst_19 {dimension_numbers = #tpu.dot_dimension_numbers<[1], [1], [0], [0], [0, 0, 1, 0], [], []>} : vector<5x8xbf16>, vector<5x8xbf16>, vector<5x5xf32> -> vector<5x5xf32>
    %cst_20 = arith.constant 0.353553385 : f32
    %41 = vector.broadcast %cst_20 : f32 to vector<5x5xf32>
    %42 = arith.mulf %40, %41 : vector<5x5xf32>
    %cst_21 = arith.constant dense<0xFF800000> : vector<5xf32>
    %43 = vector.multi_reduction <maximumf>, %42, %cst_21 [1] : vector<5x5xf32> to vector<5xf32>
    %44 = vector.shape_cast %43 : vector<5xf32> to vector<5x1xf32>
    %45 = vector.broadcast %44 : vector<5x1xf32> to vector<5x5xf32>
    %46 = arith.subf %42, %45 : vector<5x5xf32>
    %47 = math.exp %46 : vector<5x5xf32>
    %cst_22 = arith.constant dense<0.000000e+00> : vector<5xf32>
    %48 = vector.multi_reduction <add>, %47, %cst_22 [1] : vector<5x5xf32> to vector<5xf32>
    %49 = vector.shape_cast %48 : vector<5xf32> to vector<5x1xf32>
    %50 = tpu.reciprocal %49 {approx = true} : vector<5x1xf32> -> vector<5x1xf32>
    %51 = vector.broadcast %50 : vector<5x1xf32> to vector<5x5xf32>
    %52 = arith.mulf %47, %51 : vector<5x5xf32>
    %53 = arith.addf %34, %52 : vector<5x5xf32>
    %54 = arith.truncf %52 : vector<5x5xf32> to vector<5x5xbf16>
    %55 = arith.truncf %37 : vector<5x8xf32> to vector<5x8xbf16>
    %cst_23 = arith.constant dense<0.000000e+00> : vector<5x8xf32>
    %56 = tpu.matmul %54, %55, %cst_23 {dimension_numbers = #tpu.dot_dimension_numbers<[1], [0], [0], [1], [0, 0, 1, 1], [], []>} : vector<5x5xbf16>, vector<5x8xbf16>, vector<5x8xf32> -> vector<5x8xf32>
    %57 = arith.truncf %56 : vector<5x8xf32> to vector<5x8xbf16>
    %58 = vector.extract_strided_slice %32 {offsets = [0, 0], sizes = [8, 32], strides = [1, 1]} : vector<32x32xbf16> to vector<8x32xbf16>
    %cst_24 = arith.constant dense<0.000000e+00> : vector<5x32xf32>
    %59 = tpu.matmul %57, %58, %cst_24 {dimension_numbers = #tpu.dot_dimension_numbers<[1], [0], [0], [1], [0, 0, 1, 1], [], []>} : vector<5x8xbf16>, vector<8x32xbf16>, vector<5x32xf32> -> vector<5x32xf32>
    %60 = arith.addf %33, %59 : vector<5x32xf32>
    %61 = vector.extract_strided_slice %31 {offsets = [0, 8], sizes = [5, 8], strides = [1, 1]} : vector<5x96xf32> to vector<5x8xf32>
    %62 = vector.extract_strided_slice %31 {offsets = [0, 40], sizes = [5, 8], strides = [1, 1]} : vector<5x96xf32> to vector<5x8xf32>
    %63 = vector.extract_strided_slice %31 {offsets = [0, 72], sizes = [5, 8], strides = [1, 1]} : vector<5x96xf32> to vector<5x8xf32>
    %64 = arith.truncf %61 : vector<5x8xf32> to vector<5x8xbf16>
    %65 = arith.truncf %62 : vector<5x8xf32> to vector<5x8xbf16>
    %cst_25 = arith.constant dense<0.000000e+00> : vector<5x5xf32>
    %66 = tpu.matmul %64, %65, %cst_25 {dimension_numbers = #tpu.dot_dimension_numbers<[1], [1], [0], [0], [0, 0, 1, 0], [], []>} : vector<5x8xbf16>, vector<5x8xbf16>, vector<5x5xf32> -> vector<5x5xf32>
    %cst_26 = arith.constant 0.353553385 : f32
    %67 = vector.broadcast %cst_26 : f32 to vector<5x5xf32>
    %68 = arith.mulf %66, %67 : vector<5x5xf32>
    %cst_27 = arith.constant dense<0xFF800000> : vector<5xf32>
    %69 = vector.multi_reduction <maximumf>, %68, %cst_27 [1] : vector<5x5xf32> to vector<5xf32>
    %70 = vector.shape_cast %69 : vector<5xf32> to vector<5x1xf32>
    %71 = vector.broadcast %70 : vector<5x1xf32> to vector<5x5xf32>
    %72 = arith.subf %68, %71 : vector<5x5xf32>
    %73 = math.exp %72 : vector<5x5xf32>
    %cst_28 = arith.constant dense<0.000000e+00> : vector<5xf32>
    %74 = vector.multi_reduction <add>, %73, %cst_28 [1] : vector<5x5xf32> to vector<5xf32>
    %75 = vector.shape_cast %74 : vector<5xf32> to vector<5x1xf32>
    %76 = tpu.reciprocal %75 {approx = true} : vector<5x1xf32> -> vector<5x1xf32>
    %77 = vector.broadcast %76 : vector<5x1xf32> to vector<5x5xf32>
    %78 = arith.mulf %73, %77 : vector<5x5xf32>
    %79 = arith.addf %53, %78 : vector<5x5xf32>
    %80 = arith.truncf %78 : vector<5x5xf32> to vector<5x5xbf16>
    %81 = arith.truncf %63 : vector<5x8xf32> to vector<5x8xbf16>
    %cst_29 = arith.constant dense<0.000000e+00> : vector<5x8xf32>
    %82 = tpu.matmul %80, %81, %cst_29 {dimension_numbers = #tpu.dot_dimension_numbers<[1], [0], [0], [1], [0, 0, 1, 1], [], []>} : vector<5x5xbf16>, vector<5x8xbf16>, vector<5x8xf32> -> vector<5x8xf32>
    %83 = arith.truncf %82 : vector<5x8xf32> to vector<5x8xbf16>
    %84 = vector.extract_strided_slice %32 {offsets = [8, 0], sizes = [8, 32], strides = [1, 1]} : vector<32x32xbf16> to vector<8x32xbf16>
    %cst_30 = arith.constant dense<0.000000e+00> : vector<5x32xf32>
    %85 = tpu.matmul %83, %84, %cst_30 {dimension_numbers = #tpu.dot_dimension_numbers<[1], [0], [0], [1], [0, 0, 1, 1], [], []>} : vector<5x8xbf16>, vector<8x32xbf16>, vector<5x32xf32> -> vector<5x32xf32>
    %86 = arith.addf %60, %85 : vector<5x32xf32>
    %87 = vector.extract_strided_slice %31 {offsets = [0, 16], sizes = [5, 8], strides = [1, 1]} : vector<5x96xf32> to vector<5x8xf32>
    %88 = vector.extract_strided_slice %31 {offsets = [0, 48], sizes = [5, 8], strides = [1, 1]} : vector<5x96xf32> to vector<5x8xf32>
    %89 = vector.extract_strided_slice %31 {offsets = [0, 80], sizes = [5, 8], strides = [1, 1]} : vector<5x96xf32> to vector<5x8xf32>
    %90 = arith.truncf %87 : vector<5x8xf32> to vector<5x8xbf16>
    %91 = arith.truncf %88 : vector<5x8xf32> to vector<5x8xbf16>
    %cst_31 = arith.constant dense<0.000000e+00> : vector<5x5xf32>
    %92 = tpu.matmul %90, %91, %cst_31 {dimension_numbers = #tpu.dot_dimension_numbers<[1], [1], [0], [0], [0, 0, 1, 0], [], []>} : vector<5x8xbf16>, vector<5x8xbf16>, vector<5x5xf32> -> vector<5x5xf32>
    %cst_32 = arith.constant 0.353553385 : f32
    %93 = vector.broadcast %cst_32 : f32 to vector<5x5xf32>
    %94 = arith.mulf %92, %93 : vector<5x5xf32>
    %cst_33 = arith.constant dense<0xFF800000> : vector<5xf32>
    %95 = vector.multi_reduction <maximumf>, %94, %cst_33 [1] : vector<5x5xf32> to vector<5xf32>
    %96 = vector.shape_cast %95 : vector<5xf32> to vector<5x1xf32>
    %97 = vector.broadcast %96 : vector<5x1xf32> to vector<5x5xf32>
    %98 = arith.subf %94, %97 : vector<5x5xf32>
    %99 = math.exp %98 : vector<5x5xf32>
    %cst_34 = arith.constant dense<0.000000e+00> : vector<5xf32>
    %100 = vector.multi_reduction <add>, %99, %cst_34 [1] : vector<5x5xf32> to vector<5xf32>
    %101 = vector.shape_cast %100 : vector<5xf32> to vector<5x1xf32>
    %102 = tpu.reciprocal %101 {approx = true} : vector<5x1xf32> -> vector<5x1xf32>
    %103 = vector.broadcast %102 : vector<5x1xf32> to vector<5x5xf32>
    %104 = arith.mulf %99, %103 : vector<5x5xf32>
    %105 = arith.addf %79, %104 : vector<5x5xf32>
    %106 = arith.truncf %104 : vector<5x5xf32> to vector<5x5xbf16>
    %107 = arith.truncf %89 : vector<5x8xf32> to vector<5x8xbf16>
    %cst_35 = arith.constant dense<0.000000e+00> : vector<5x8xf32>
    %108 = tpu.matmul %106, %107, %cst_35 {dimension_numbers = #tpu.dot_dimension_numbers<[1], [0], [0], [1], [0, 0, 1, 1], [], []>} : vector<5x5xbf16>, vector<5x8xbf16>, vector<5x8xf32> -> vector<5x8xf32>
    %109 = arith.truncf %108 : vector<5x8xf32> to vector<5x8xbf16>
    %110 = vector.extract_strided_slice %32 {offsets = [16, 0], sizes = [8, 32], strides = [1, 1]} : vector<32x32xbf16> to vector<8x32xbf16>
    %cst_36 = arith.constant dense<0.000000e+00> : vector<5x32xf32>
    %111 = tpu.matmul %109, %110, %cst_36 {dimension_numbers = #tpu.dot_dimension_numbers<[1], [0], [0], [1], [0, 0, 1, 1], [], []>} : vector<5x8xbf16>, vector<8x32xbf16>, vector<5x32xf32> -> vector<5x32xf32>
    %112 = arith.addf %86, %111 : vector<5x32xf32>
    %113 = vector.extract_strided_slice %31 {offsets = [0, 24], sizes = [5, 8], strides = [1, 1]} : vector<5x96xf32> to vector<5x8xf32>
    %114 = vector.extract_strided_slice %31 {offsets = [0, 56], sizes = [5, 8], strides = [1, 1]} : vector<5x96xf32> to vector<5x8xf32>
    %115 = vector.extract_strided_slice %31 {offsets = [0, 88], sizes = [5, 8], strides = [1, 1]} : vector<5x96xf32> to vector<5x8xf32>
    %116 = arith.truncf %113 : vector<5x8xf32> to vector<5x8xbf16>
    %117 = arith.truncf %114 : vector<5x8xf32> to vector<5x8xbf16>
    %cst_37 = arith.constant dense<0.000000e+00> : vector<5x5xf32>
    %118 = tpu.matmul %116, %117, %cst_37 {dimension_numbers = #tpu.dot_dimension_numbers<[1], [1], [0], [0], [0, 0, 1, 0], [], []>} : vector<5x8xbf16>, vector<5x8xbf16>, vector<5x5xf32> -> vector<5x5xf32>
    %cst_38 = arith.constant 0.353553385 : f32
    %119 = vector.broadcast %cst_38 : f32 to vector<5x5xf32>
    %120 = arith.mulf %118, %119 : vector<5x5xf32>
    %cst_39 = arith.constant dense<0xFF800000> : vector<5xf32>
    %121 = vector.multi_reduction <maximumf>, %120, %cst_39 [1] : vector<5x5xf32> to vector<5xf32>
    %122 = vector.shape_cast %121 : vector<5xf32> to vector<5x1xf32>
    %123 = vector.broadcast %122 : vector<5x1xf32> to vector<5x5xf32>
    %124 = arith.subf %120, %123 : vector<5x5xf32>
    %125 = math.exp %124 : vector<5x5xf32>
    %cst_40 = arith.constant dense<0.000000e+00> : vector<5xf32>
    %126 = vector.multi_reduction <add>, %125, %cst_40 [1] : vector<5x5xf32> to vector<5xf32>
    %127 = vector.shape_cast %126 : vector<5xf32> to vector<5x1xf32>
    %128 = tpu.reciprocal %127 {approx = true} : vector<5x1xf32> -> vector<5x1xf32>
    %129 = vector.broadcast %128 : vector<5x1xf32> to vector<5x5xf32>
    %130 = arith.mulf %125, %129 : vector<5x5xf32>
    %131 = arith.addf %105, %130 : vector<5x5xf32>
    %132 = arith.truncf %130 : vector<5x5xf32> to vector<5x5xbf16>
    %133 = arith.truncf %115 : vector<5x8xf32> to vector<5x8xbf16>
    %cst_41 = arith.constant dense<0.000000e+00> : vector<5x8xf32>
    %134 = tpu.matmul %132, %133, %cst_41 {dimension_numbers = #tpu.dot_dimension_numbers<[1], [0], [0], [1], [0, 0, 1, 1], [], []>} : vector<5x5xbf16>, vector<5x8xbf16>, vector<5x8xf32> -> vector<5x8xf32>
    %135 = arith.truncf %134 : vector<5x8xf32> to vector<5x8xbf16>
    %136 = vector.extract_strided_slice %32 {offsets = [24, 0], sizes = [8, 32], strides = [1, 1]} : vector<32x32xbf16> to vector<8x32xbf16>
    %cst_42 = arith.constant dense<0.000000e+00> : vector<5x32xf32>
    %137 = tpu.matmul %135, %136, %cst_42 {dimension_numbers = #tpu.dot_dimension_numbers<[1], [0], [0], [1], [0, 0, 1, 1], [], []>} : vector<5x8xbf16>, vector<8x32xbf16>, vector<5x32xf32> -> vector<5x32xf32>
    %138 = arith.addf %112, %137 : vector<5x32xf32>
    %cst_43 = arith.constant 2.500000e-01 : f32
    %139 = vector.broadcast %cst_43 : f32 to vector<5x5xf32>
    %140 = arith.mulf %131, %139 : vector<5x5xf32>
    %c0_44 = arith.constant 0 : index
    %c0_45 = arith.constant 0 : index
    %c0_46 = arith.constant 0 : index
    %141 = vector.load %arg15[%c0_44, %c0_45, %c0_46] : memref<1x5x5xf32, #tpu.memory_space<vmem>>, vector<1x5x5xf32>
    %142 = vector.shape_cast %141 : vector<1x5x5xf32> to vector<5x5xf32>
    %143 = vector.shape_cast %140 : vector<5x5xf32> to vector<1x5x5xf32>
    tpu.vector_store %arg15[%c0_44, %c0_45, %c0_46], %143 {strides = array<i32>} : memref<1x5x5xf32, #tpu.memory_space<vmem>>, vector<1x5x5xf32>,
    %144 = arith.addf %1, %138 : vector<5x32xf32>
    %c0_47 = arith.constant 0 : index
    %c0_48 = arith.constant 0 : index
    %145 = vector.load %arg7[%c0_47, %c0_48] : memref<1x32xf32, #tpu.memory_space<vmem>>, vector<1x32xf32>
    %146 = vector.broadcast %145 : vector<1x32xf32> to vector<5x32xf32>
    %147 = arith.addf %144, %146 : vector<5x32xf32>
    %c0_49 = arith.constant 0 : index
    %c0_50 = arith.constant 0 : index
    %148 = vector.load %arg8[%c0_49, %c0_50] : memref<1x32xf32, #tpu.memory_space<vmem>>, vector<1x32xf32>
    %c0_51 = arith.constant 0 : index
    %c0_52 = arith.constant 0 : index
    %149 = vector.load %arg9[%c0_51, %c0_52] : memref<1x32xf32, #tpu.memory_space<vmem>>, vector<1x32xf32>
    %cst_53 = arith.constant dense<0.000000e+00> : vector<5xf32>
    %150 = vector.multi_reduction <add>, %147, %cst_53 [1] : vector<5x32xf32> to vector<5xf32>
    %151 = vector.shape_cast %150 : vector<5xf32> to vector<5x1xf32>
    %cst_54 = arith.constant 3.200000e+01 : f32
    %152 = vector.broadcast %cst_54 : f32 to vector<5x1xf32>
    %153 = arith.divf %151, %152 : vector<5x1xf32>
    %154 = vector.broadcast %153 : vector<5x1xf32> to vector<5x32xf32>
    %155 = arith.subf %147, %154 : vector<5x32xf32>
    %156 = arith.mulf %155, %155 : vector<5x32xf32>
    %cst_55 = arith.constant dense<0.000000e+00> : vector<5xf32>
    %157 = vector.multi_reduction <add>, %156, %cst_55 [1] : vector<5x32xf32> to vector<5xf32>
    %158 = vector.shape_cast %157 : vector<5xf32> to vector<5x1xf32>
    %cst_56 = arith.constant 3.200000e+01 : f32
    %159 = vector.broadcast %cst_56 : f32 to vector<5x1xf32>
    %160 = arith.divf %158, %159 : vector<5x1xf32>
    %161 = vector.broadcast %153 : vector<5x1xf32> to vector<5x32xf32>
    %162 = arith.subf %147, %161 : vector<5x32xf32>
    %cst_57 = arith.constant 9.99999974E-6 : f32
    %163 = vector.broadcast %cst_57 : f32 to vector<5x1xf32>
    %164 = arith.addf %160, %163 : vector<5x1xf32>
    %165 = math.rsqrt %164 : vector<5x1xf32>
    %166 = vector.broadcast %165 : vector<5x1xf32> to vector<5x32xf32>
    %167 = arith.mulf %162, %166 : vector<5x32xf32>
    %168 = vector.broadcast %148 : vector<1x32xf32> to vector<5x32xf32>
    %169 = arith.mulf %167, %168 : vector<5x32xf32>
    %170 = vector.broadcast %149 : vector<1x32xf32> to vector<5x32xf32>
    %171 = arith.addf %169, %170 : vector<5x32xf32>
    %172 = arith.truncf %171 : vector<5x32xf32> to vector<5x32xbf16>
    %c0_58 = arith.constant 0 : index
    %c0_59 = arith.constant 0 : index
    %173 = vector.load %arg10[%c0_58, %c0_59] : memref<32x64xbf16, #tpu.memory_space<vmem>>, vector<32x64xbf16>
    %cst_60 = arith.constant dense<0.000000e+00> : vector<5x64xf32>
    %174 = tpu.matmul %172, %173, %cst_60 {dimension_numbers = #tpu.dot_dimension_numbers<[1], [0], [0], [1], [0, 0, 1, 1], [], []>} : vector<5x32xbf16>, vector<32x64xbf16>, vector<5x64xf32> -> vector<5x64xf32>
    %c0_61 = arith.constant 0 : index
    %c0_62 = arith.constant 0 : index
    %175 = vector.load %arg11[%c0_61, %c0_62] : memref<1x64xf32, #tpu.memory_space<vmem>>, vector<1x64xf32>
    %176 = vector.broadcast %175 : vector<1x64xf32> to vector<5x64xf32>
    %177 = arith.addf %174, %176 : vector<5x64xf32>
    %cst_63 = arith.constant 5.000000e-01 : f32
    %178 = vector.broadcast %cst_63 : f32 to vector<5x64xf32>
    %179 = arith.mulf %178, %177 : vector<5x64xf32>
    %cst_64 = arith.constant 0.707106769 : f32
    %180 = vector.broadcast %cst_64 : f32 to vector<5x64xf32>
    %181 = arith.mulf %177, %180 : vector<5x64xf32>
    %182 = math.erf %181 : vector<5x64xf32>
    %cst_65 = arith.constant 1.000000e+00 : f32
    %183 = vector.broadcast %cst_65 : f32 to vector<5x64xf32>
    %184 = arith.addf %183, %182 : vector<5x64xf32>
    %185 = arith.mulf %179, %184 : vector<5x64xf32>
    %186 = arith.truncf %185 : vector<5x64xf32> to vector<5x64xbf16>
    %c0_66 = arith.constant 0 : index
    %c0_67 = arith.constant 0 : index
    %187 = vector.load %arg12[%c0_66, %c0_67] : memref<64x32xbf16, #tpu.memory_space<vmem>>, vector<64x32xbf16>
    %cst_68 = arith.constant dense<0.000000e+00> : vector<5x32xf32>
    %188 = tpu.matmul %186, %187, %cst_68 {dimension_numbers = #tpu.dot_dimension_numbers<[1], [0], [0], [1], [0, 0, 1, 1], [], []>} : vector<5x64xbf16>, vector<64x32xbf16>, vector<5x32xf32> -> vector<5x32xf32>
    %c0_69 = arith.constant 0 : index
    %c0_70 = arith.constant 0 : index
    %189 = vector.load %arg13[%c0_69, %c0_70] : memref<1x32xf32, #tpu.memory_space<vmem>>, vector<1x32xf32>
    %190 = vector.broadcast %189 : vector<1x32xf32> to vector<5x32xf32>
    %191 = arith.addf %188, %190 : vector<5x32xf32>
    %192 = arith.addf %147, %191 : vector<5x32xf32>
    %c0_71 = arith.constant 0 : index
    %c0_72 = arith.constant 0 : index
    %c0_73 = arith.constant 0 : index
    %193 = vector.load %arg14[%c0_71, %c0_72, %c0_73] : memref<1x5x32xf32, #tpu.memory_space<vmem>>, vector<1x5x32xf32>
    %194 = vector.shape_cast %193 : vector<1x5x32xf32> to vector<5x32xf32>
    %195 = vector.shape_cast %192 : vector<5x32xf32> to vector<1x5x32xf32>
    tpu.vector_store %arg14[%c0_71, %c0_72, %c0_73], %195 {strides = array<i32>} : memref<1x5x32xf32, #tpu.memory_space<vmem>>, vector<1x5x32xf32>,
    return
  }
  func.func @transform_0(%arg0: i32) -> (i32, i32, i32) {
    %c0_i32 = arith.constant 0 : i32
    %c0_i32_0 = arith.constant 0 : i32
    %c0_i32_1 = arith.constant 0 : i32
    return %arg0, %c0_i32, %c0_i32_0 : i32, i32, i32
  }
  func.func @transform_1(%arg0: i32) -> (i32, i32) {
    %c0_i32 = arith.constant 0 : i32
    %c0_i32_0 = arith.constant 0 : i32
    %c0_i32_1 = arith.constant 0 : i32
    return %c0_i32, %c0_i32_0 : i32, i32
  }
  func.func @transform_2(%arg0: i32) -> (i32, i32) {
    %c0_i32 = arith.constant 0 : i32
    %c0_i32_0 = arith.constant 0 : i32
    %c0_i32_1 = arith.constant 0 : i32
    return %c0_i32, %c0_i32_0 : i32, i32
  }
  func.func @transform_3(%arg0: i32) -> (i32, i32) {
    %c0_i32 = arith.constant 0 : i32
    %c0_i32_0 = arith.constant 0 : i32
    %c0_i32_1 = arith.constant 0 : i32
    return %c0_i32, %c0_i32_0 : i32, i32
  }
  func.func @transform_4(%arg0: i32) -> (i32, i32) {
    %c0_i32 = arith.constant 0 : i32
    %c0_i32_0 = arith.constant 0 : i32
    %c0_i32_1 = arith.constant 0 : i32
    return %c0_i32, %c0_i32_0 : i32, i32
  }
  func.func @transform_5(%arg0: i32) -> (i32, i32) {
    %c0_i32 = arith.constant 0 : i32
    %c0_i32_0 = arith.constant 0 : i32
    %c0_i32_1 = arith.constant 0 : i32
    return %c0_i32, %c0_i32_0 : i32, i32
  }
  func.func @transform_6(%arg0: i32) -> (i32, i32) {
    %c0_i32 = arith.constant 0 : i32
    %c0_i32_0 = arith.constant 0 : i32
    %c0_i32_1 = arith.constant 0 : i32
    return %c0_i32, %c0_i32_0 : i32, i32
  }
  func.func @transform_7(%arg0: i32) -> (i32, i32) {
    %c0_i32 = arith.constant 0 : i32
    %c0_i32_0 = arith.constant 0 : i32
    %c0_i32_1 = arith.constant 0 : i32
    return %c0_i32, %c0_i32_0 : i32, i32
  }
  func.func @transform_8(%arg0: i32) -> (i32, i32) {
    %c0_i32 = arith.constant 0 : i32
    %c0_i32_0 = arith.constant 0 : i32
    %c0_i32_1 = arith.constant 0 : i32
    return %c0_i32, %c0_i32_0 : i32, i32
  }
  func.func @transform_9(%arg0: i32) -> (i32, i32) {
    %c0_i32 = arith.constant 0 : i32
    %c0_i32_0 = arith.constant 0 : i32
    %c0_i32_1 = arith.constant 0 : i32
    return %c0_i32, %c0_i32_0 : i32, i32
  }
  func.func @transform_10(%arg0: i32) -> (i32, i32) {
    %c0_i32 = arith.constant 0 : i32
    %c0_i32_0 = arith.constant 0 : i32
    %c0_i32_1 = arith.constant 0 : i32
    return %c0_i32, %c0_i32_0 : i32, i32
  }
  func.func @transform_11(%arg0: i32) -> (i32, i32) {
    %c0_i32 = arith.constant 0 : i32
    %c0_i32_0 = arith.constant 0 : i32
    %c0_i32_1 = arith.constant 0 : i32
    return %c0_i32, %c0_i32_0 : i32, i32
  }
  func.func @transform_12(%arg0: i32) -> (i32, i32) {
    %c0_i32 = arith.constant 0 : i32
    %c0_i32_0 = arith.constant 0 : i32
    %c0_i32_1 = arith.constant 0 : i32
    return %c0_i32, %c0_i32_0 : i32, i32
  }
  func.func @transform_13(%arg0: i32) -> (i32, i32, i32) {
    %c0_i32 = arith.constant 0 : i32
    %c0_i32_0 = arith.constant 0 : i32
    %c0_i32_1 = arith.constant 0 : i32
    return %arg0, %c0_i32, %c0_i32_0 : i32, i32, i32
  }
  func.func @transform_14(%arg0: i32) -> (i32, i32, i32) {
    %c0_i32 = arith.constant 0 : i32
    %c0_i32_0 = arith.constant 0 : i32
    %c0_i32_1 = arith.constant 0 : i32
    return %arg0, %c0_i32, %c0_i32_0 : i32, i32, i32
  }
}

module attributes {stable_mosaic.version = 11 : i64} {
  func.func @_final_head_kernel(%arg0: memref<2x32xf32, #tpu.memory_space<vmem>>, %arg1: memref<1x32xf32, #tpu.memory_space<vmem>>, %arg2: memref<1x32xf32, #tpu.memory_space<vmem>>, %arg3: memref<32x128xbf16, #tpu.memory_space<vmem>>, %arg4: memref<1x128xf32, #tpu.memory_space<vmem>>, %arg5: memref<2x128xf32, #tpu.memory_space<vmem>>) attributes {dimension_semantics = [], scalar_prefetch = 0 : i64, scratch_operands = 0 : i64, tpu.core_type = #tpu.core_type<tc>} {
    %c0 = arith.constant 0 : index
    %c0_0 = arith.constant 0 : index
    %0 = vector.load %arg0[%c0, %c0_0] : memref<2x32xf32, #tpu.memory_space<vmem>>, vector<2x32xf32>
    %c0_1 = arith.constant 0 : index
    %c0_2 = arith.constant 0 : index
    %1 = vector.load %arg1[%c0_1, %c0_2] : memref<1x32xf32, #tpu.memory_space<vmem>>, vector<1x32xf32>
    %c0_3 = arith.constant 0 : index
    %c0_4 = arith.constant 0 : index
    %2 = vector.load %arg2[%c0_3, %c0_4] : memref<1x32xf32, #tpu.memory_space<vmem>>, vector<1x32xf32>
    %cst = arith.constant dense<0.000000e+00> : vector<2xf32>
    %3 = vector.multi_reduction <add>, %0, %cst [1] : vector<2x32xf32> to vector<2xf32>
    %4 = vector.shape_cast %3 : vector<2xf32> to vector<2x1xf32>
    %cst_5 = arith.constant 3.200000e+01 : f32
    %5 = vector.broadcast %cst_5 : f32 to vector<2x1xf32>
    %6 = arith.divf %4, %5 : vector<2x1xf32>
    %7 = vector.broadcast %6 : vector<2x1xf32> to vector<2x32xf32>
    %8 = arith.subf %0, %7 : vector<2x32xf32>
    %9 = arith.mulf %8, %8 : vector<2x32xf32>
    %cst_6 = arith.constant dense<0.000000e+00> : vector<2xf32>
    %10 = vector.multi_reduction <add>, %9, %cst_6 [1] : vector<2x32xf32> to vector<2xf32>
    %11 = vector.shape_cast %10 : vector<2xf32> to vector<2x1xf32>
    %cst_7 = arith.constant 3.200000e+01 : f32
    %12 = vector.broadcast %cst_7 : f32 to vector<2x1xf32>
    %13 = arith.divf %11, %12 : vector<2x1xf32>
    %14 = vector.broadcast %6 : vector<2x1xf32> to vector<2x32xf32>
    %15 = arith.subf %0, %14 : vector<2x32xf32>
    %cst_8 = arith.constant 9.99999974E-6 : f32
    %16 = vector.broadcast %cst_8 : f32 to vector<2x1xf32>
    %17 = arith.addf %13, %16 : vector<2x1xf32>
    %18 = math.rsqrt %17 : vector<2x1xf32>
    %19 = vector.broadcast %18 : vector<2x1xf32> to vector<2x32xf32>
    %20 = arith.mulf %15, %19 : vector<2x32xf32>
    %21 = vector.broadcast %1 : vector<1x32xf32> to vector<2x32xf32>
    %22 = arith.mulf %20, %21 : vector<2x32xf32>
    %23 = vector.broadcast %2 : vector<1x32xf32> to vector<2x32xf32>
    %24 = arith.addf %22, %23 : vector<2x32xf32>
    %25 = arith.truncf %24 : vector<2x32xf32> to vector<2x32xbf16>
    %c0_9 = arith.constant 0 : index
    %c0_10 = arith.constant 0 : index
    %26 = vector.load %arg3[%c0_9, %c0_10] : memref<32x128xbf16, #tpu.memory_space<vmem>>, vector<32x128xbf16>
    %cst_11 = arith.constant dense<0.000000e+00> : vector<2x128xf32>
    %27 = tpu.matmul %25, %26, %cst_11 {dimension_numbers = #tpu.dot_dimension_numbers<[1], [0], [0], [1], [0, 0, 1, 1], [], []>} : vector<2x32xbf16>, vector<32x128xbf16>, vector<2x128xf32> -> vector<2x128xf32>
    %c0_12 = arith.constant 0 : index
    %c0_13 = arith.constant 0 : index
    %28 = vector.load %arg4[%c0_12, %c0_13] : memref<1x128xf32, #tpu.memory_space<vmem>>, vector<1x128xf32>
    %29 = vector.broadcast %28 : vector<1x128xf32> to vector<2x128xf32>
    %30 = arith.addf %27, %29 : vector<2x128xf32>
    %c0_14 = arith.constant 0 : index
    %c0_15 = arith.constant 0 : index
    %31 = vector.load %arg5[%c0_14, %c0_15] : memref<2x128xf32, #tpu.memory_space<vmem>>, vector<2x128xf32>
    tpu.vector_store %arg5[%c0_14, %c0_15], %30 {strides = array<i32>} : memref<2x128xf32, #tpu.memory_space<vmem>>, vector<2x128xf32>,
    return
  }
}

</mosaic_0001>

<llo_original>
// kernel: vit_forward.7
$region0: #{vit_forward.7}
  #allocation0 [shape = 'u32[]', space=smem, size = 0x4, offset = 0x4, fixed_abs, tag = 'smem constant byte address 0x4 - core index']
  #allocation1 [shape = 'u32[144,128]{1,0:T(1,128)}', space=vmem, size = 0x12000, scoped, tag = 'internal scratch']
  %s0 = inlined_call_operand.vmem [shape: f32[2,32], index: 0, kind: input, shape index: {}]
  %s1 = inlined_call_operand.vmem [shape: f32[1,32], index: 1, kind: input, shape index: {}]
  %s2 = inlined_call_operand.vmem [shape: f32[1,32], index: 2, kind: input, shape index: {}]
  %s3 = inlined_call_operand.vmem [shape: bf16[32,128], index: 3, kind: input, shape index: {}]
  %s4 = inlined_call_operand.vmem [shape: f32[1,128], index: 4, kind: input, shape index: {}]
  %s5 = inlined_call_operand.hbm [shape: f32[2,128], index: 5, kind: output, shape index: {}]
  %s6 = sld [smem:[#allocation0]]
  $region30: #{vit_forward.7} parent=0
    _
  %s8 = ssub.s32 1, %s6
  %s9 = scalar_select 0, %s8, %s6
  $region1: #{vit_forward.7} parent=0
    #allocation2 [shape = 'u8[1024]{0}', space=vmem, size = 0x400, scoped, tag = 'output window, operand 0, single buffered']
    #allocation3 [shape = 's32[1]{0}', space=sflag, size = 0x4, scoped, tag = 'scoped memory for vit_forward.7']
    %10 = vsyncpa [#allocation3], 0
    // Predicated region
    $region2: #{vit_forward.7} parent=1 // pred_check
      _
    $region3: #{vit_forward.7} parent=1 // pred_check_branch
      %12 = sbr.rel (0) target = $region5
    $region4: #{vit_forward.7} parent=1 // pred_region
      _
    $region5: #{vit_forward.7} parent=1 // pred_fallthru
      _
    // Predicated region
    $region6: #{vit_forward.7} parent=1 // pred_check
      _
    $region7: #{vit_forward.7} parent=1 // pred_check_branch
      %14 = sbr.rel (0) target = $region9
    $region8: #{vit_forward.7} parent=1 // pred_region
      _
    $region9: #{vit_forward.7} parent=1 // pred_fallthru
      _
    // Predicated region
    $region10: #{vit_forward.7} parent=1 // pred_check
      _
    $region11: #{vit_forward.7} parent=1 // pred_check_branch
      %16 = sbr.rel (0) target = $region13
    $region12: #{vit_forward.7} parent=1 // pred_region
      _
    $region13: #{vit_forward.7} parent=1 // pred_fallthru
      _
    // Predicated region
    $region14: #{vit_forward.7} parent=1 // pred_check
      _
    $region15: #{vit_forward.7} parent=1 // pred_check_branch
      %18 = sbr.rel (0) target = $region17
    $region16: #{vit_forward.7} parent=1 // pred_region
      _
    $region17: #{vit_forward.7} parent=1 // pred_fallthru
      _
    // Predicated region
    $region18: #{vit_forward.7} parent=1 // pred_check
      _
    $region19: #{vit_forward.7} parent=1 // pred_check_branch
      %20 = sbr.rel (0) target = $region21
    $region20: #{vit_forward.7} parent=1 // pred_region
      _
    $region21: #{vit_forward.7} parent=1 // pred_fallthru
      _
    %v22 = vld [vmem:[%s0] sm:$0x3]
    %v23 = vld [vmem:[%s1] sm:$0x1]
    %v24 = vld [vmem:[%s2] sm:$0x1]
    %vm25 = vcmask 254976
    %v26 = vsel %vm25, %v22, 0.0
    %27 = vadd.xlane.f32.xlu0 %v26
    %v28 = vpop.xlane.xlu0 %27
    %v29 = vrcp.pop 32.0
    %v30 = vmul.f32 %v28, %v29
    %v31 = vsub.f32 %v22, %v30
    %v32 = vmul.f32 %v31, %v31
    %v33 = vsel %vm25, %v32, 0.0
    %34 = vadd.xlane.f32.xlu0 %v33
    %v35 = vpop.xlane.xlu0 %34
    %v36 = vmul.f32 %v35, %v29
    %v37 = vadd.f32 %v36, 1e-05
    %v38 = vrsqrt.pop %v37
    %v39 = vmul.f32 %v31, %v38
    %v41 = vlaneseq
    %v42 = vshrl.u32 %v41, 7
    %v43 = vsub.s32 0, %v42
    %v44 = vrot.slane %v23, %v43
    %v46 = vmul.f32 %v39, %v44
    %v48 = vlaneseq
    %v49 = vshrl.u32 %v48, 7
    %v50 = vsub.s32 0, %v49
    %v51 = vrot.slane %v24, %v50
    %v53 = vadd.f32 %v46, %v51
    %v54 = vpack.c.bf16 %v53, %v53
    %v55 = vld [vmem:[%s3] sm:$0xf]
    %v56 = vld [vmem:[%s3 + $0x4] sm:$0xf]
    %v57 = vld [vmem:[%s3 + $0x8] sm:$0xf]
    %v58 = vld [vmem:[%s3 + $0xc] sm:$0xf]
    %v59 = vld [vmem:[%s4] sm:$0x1]
    %v61 = vlaneseq
    %v62 = vshrl.u32 %v61, 7
    %v63 = vsub.s32 0, %v62
    %v64 = vrot.slane %v59, %v63
    %v70 = vunpack.c.l.b16 %v55
    %v71 = vunpack.c.l.b16 %v56
    %v72 = vunpack.c.l.b16 %v57
    %v73 = vunpack.c.l.b16 %v58
    %v74 = vpack.c.b16 %v71, %v70
    %v75 = vpack.c.b16 %v73, %v72
    %vm78 = vcmask 261120
    %v80 = vsel %vm78, %v54, 0
    %82 = vmatprep.subr.bf16.mxu0 0
    %83 = vmatpush1.bf16.msra.mxu0 %v74
    %84 = vmatprep.subr.bf16.mxu0 0
    %85 = vmatpush1.bf16.msra.mxu0 %v75
    %86 = vmatprep.subr.bf16.mxu0 0
    %87 = vmatpush1.bf16.msra.mxu0 0
    %88 = vmatprep.subr.bf16.mxu0 0
    %89 = vmatpush1.bf16.msra.mxu0 0
    %90 = vmatprep.subr.bf16.mxu0 0
    %91 = vmatpush1.bf16.msra.mxu0 0
    %92 = vmatprep.subr.bf16.mxu0 0
    %93 = vmatpush1.bf16.msra.mxu0 0
    %94 = vmatprep.subr.bf16.mxu0 0
    %95 = vmatpush1.bf16.msra.mxu0 0
    %96 = vmatprep.subr.bf16.mxu0 0
    %97 = vmatpush1.bf16.msra.mxu0 0
    %98 = vmatprep.subr.bf16.mxu0 0
    %99 = vmatpush1.bf16.msra.mxu0 0
    %100 = vmatprep.subr.bf16.mxu0 0
    %101 = vmatpush1.bf16.msra.mxu0 0
    %102 = vmatprep.subr.bf16.mxu0 0
    %103 = vmatpush1.bf16.msra.mxu0 0
    %104 = vmatprep.subr.bf16.mxu0 0
    %105 = vmatpush1.bf16.msra.mxu0 0
    %106 = vmatprep.subr.bf16.mxu0 0
    %107 = vmatpush1.bf16.msra.mxu0 0
    %108 = vmatprep.subr.bf16.mxu0 0
    %109 = vmatpush1.bf16.msra.mxu0 0
    %110 = vmatprep.subr.bf16.mxu0 0
    %111 = vmatpush1.bf16.msra.mxu0 0
    %112 = vmatprep.subr.bf16.mxu0 0
    %113 = vmatpush1.bf16.msra.mxu0 0
    %114 = vmatprep.mubr.bf16.mxu0 0
    %115 = vmatmul.mubr.bf16.gmra.mrb[0].mxu0 %v80
    %v116 = vpop.f32.mrb[0].mxu0
    %v117 = vadd.f32 %v64, %v116
    %v118 = vpop.f32.mrb[0].mxu0
    %v119 = vpop.f32.mrb[0].mxu0
    %v120 = vpop.f32.mrb[0].mxu0
    %121 = vdwg.mxu0
    %122 = vst [vmem:[#allocation2] sm:$0x3] %v117
    // Predicated region
    $region22: #{vit_forward.7} parent=1 // pred_check
      _
    $region23: #{vit_forward.7} parent=1 // pred_check_branch
      %124 = sbr.rel (0) target = $region25
    $region24: #{vit_forward.7} parent=1 // pred_region
      %s126 = ssub.s32 32, 32
      %127 = vsyncadd [#allocation3], %s126
      %s129 = sshll.u32 [#allocation2], 4
      %s130 = int_to_ptr.vmem [resolvable:$true] %s129
      %132 = dma.vmem_to_hbm [thread:$0]  %s130, 32, %s5, [#allocation3]
    $region25: #{vit_forward.7} parent=1 // pred_fallthru
      _
    // Predicated region
    $region26: #{vit_forward.7} parent=1 // pred_check
      _
    $region27: #{vit_forward.7} parent=1 // pred_check_branch
      %134 = sbr.rel (0) target = $region29
    $region28: #{vit_forward.7} parent=1 // pred_region
      %135 = dma.done [#allocation3], 32
    $region29: #{vit_forward.7} parent=1 // pred_fallthru
      _
    %136 = vsyncpa [#allocation3], 1

// kernel: vit_forward.4
$region0: #{vit_forward.4}
  #allocation0 [shape = 'u32[]', space=smem, size = 0x4, offset = 0x4, fixed_abs, tag = 'smem constant byte address 0x4 - core index']
  #allocation1 [shape = 'u32[144,128]{1,0:T(1,128)}', space=vmem, size = 0x12000, scoped, tag = 'internal scratch']
  %s0 = inlined_call_operand.vmem [shape: f32[2,5,256], index: 0, kind: input, shape index: {}]
  %s1 = inlined_call_operand.vmem [shape: bf16[256,32], index: 1, kind: input, shape index: {}]
  %s2 = inlined_call_operand.vmem [shape: f32[1,32], index: 2, kind: input, shape index: {}]
  %s3 = inlined_call_operand.vmem [shape: f32[1,32], index: 3, kind: input, shape index: {}]
  %s4 = inlined_call_operand.vmem [shape: f32[5,32], index: 4, kind: input, shape index: {}]
  %s5 = inlined_call_operand.vmem [shape: f32[2,5,32], index: 5, kind: output, shape index: {}]
  %s6 = sld [smem:[#allocation0]]
  $region53: #{vit_forward.4} parent=0
    _
  %s8 = ssub.s32 1, %s6
  %s9 = scalar_select 0, %s8, %s6
  loop: start=0, step=1, limit=4
  $region2: #{vit_forward.4} parent=0 // loop_pre_header
    _
  $region3: #{vit_forward.4} parent=0 // loop_header
    %s11 = sphi 0, %s15
    %p12 = scmp.ge.s32.totalorder %s11, 4
    %s21 = sphi 0, %s23
    %s24 = sphi 0, %s21
    %s25 = sphi 0, %s24
    %s41 = sphi 0, %s25
    %s45 = sphi 0, %s45
    %s47 = sphi 0, %s45
    %s48 = sphi 0, %s47
    %s62 = sphi 0, %s48
    %s66 = sphi 0, %s66
    %s68 = sphi 0, %s66
    %s69 = sphi 0, %s68
    %s83 = sphi 0, %s69
    %s87 = sphi 0, %s87
    %s89 = sphi 0, %s87
    %s90 = sphi 0, %s89
    %s104 = sphi 0, %s90
    %s108 = sphi 0, %s108
    %s110 = sphi 0, %s108
    %s111 = sphi 0, %s110
    %s125 = sphi 0, %s111
    %s131 = sphi 0, %s133
    %s134 = sphi 0, %s131
    %s135 = sphi 0, %s134
    %s151 = sphi 0, %s135
  $region4: #{vit_forward.4} parent=0 // loop_header_branch
    %14 = sbr.rel (%p12) target = $region8
  $region5: #{vit_forward.4} parent=0 // loop_body
    %s16 = ssub.s32 %s11, 1
    %s17 = ssub.s32 %s11, 2
    %s18 = sadd.s32 %s11, 1
    %s19 = ssub.s32 %s11, %s18
    %p20 = scmp.eq.s32.totalorder %s19, 0
    %s22 = sadd.s32 %s21, 1
    %s23 = scalar_select %p20, %s21, %s22
    %p26 = pneg %p20
    %p27 = scmp.eq.s32.totalorder %s11, 1
    %p28 = por %p26, %p27
    %p29 = scmp.ne.s32.totalorder %s21, %s24
    %p30 = scmp.eq.s32.totalorder %s11, 0
    %p31 = por %p29, %p30
    %p32 = scmp.ne.s32.totalorder %s21, %s24
    %p33 = scmp.eq.s32.totalorder %s16, 1
    %p34 = por %p32, %p33
    %p35 = scmp.ne.s32.totalorder %s24, %s25
    %p36 = scmp.eq.s32.totalorder %s16, 0
    %p37 = por %p35, %p36
    %p38 = scmp.ne.s32.totalorder %s24, %s25
    %p39 = scmp.eq.s32.totalorder %s17, 1
    %p40 = por %p38, %p39
    %p42 = scmp.ne.s32.totalorder %s25, %s41
    %p43 = scmp.eq.s32.totalorder %s17, 0
    %p44 = por %p42, %p43
    %s46 = sadd.s32 %s45, 1
    %p49 = scmp.eq.s32.totalorder %s11, 1
    %p50 = scmp.ne.s32.totalorder %s45, %s47
    %p51 = scmp.eq.s32.totalorder %s11, 0
    %p52 = por %p50, %p51
    %p53 = scmp.ne.s32.totalorder %s45, %s47
    %p54 = scmp.eq.s32.totalorder %s16, 1
    %p55 = por %p53, %p54
    %p56 = scmp.ne.s32.totalorder %s47, %s48
    %p57 = scmp.eq.s32.totalorder %s16, 0
    %p58 = por %p56, %p57
    %p59 = scmp.ne.s32.totalorder %s47, %s48
    %p60 = scmp.eq.s32.totalorder %s17, 1
    %p61 = por %p59, %p60
    %p63 = scmp.ne.s32.totalorder %s48, %s62
    %p64 = scmp.eq.s32.totalorder %s17, 0
    %p65 = por %p63, %p64
    %s67 = sadd.s32 %s66, 1
    %p70 = scmp.eq.s32.totalorder %s11, 1
    %p71 = scmp.ne.s32.totalorder %s66, %s68
    %p72 = scmp.eq.s32.totalorder %s11, 0
    %p73 = por %p71, %p72
    %p74 = scmp.ne.s32.totalorder %s66, %s68
    %p75 = scmp.eq.s32.totalorder %s16, 1
    %p76 = por %p74, %p75
    %p77 = scmp.ne.s32.totalorder %s68, %s69
    %p78 = scmp.eq.s32.totalorder %s16, 0
    %p79 = por %p77, %p78
    %p80 = scmp.ne.s32.totalorder %s68, %s69
    %p81 = scmp.eq.s32.totalorder %s17, 1
    %p82 = por %p80, %p81
    %p84 = scmp.ne.s32.totalorder %s69, %s83
    %p85 = scmp.eq.s32.totalorder %s17, 0
    %p86 = por %p84, %p85
    %s88 = sadd.s32 %s87, 1
    %p91 = scmp.eq.s32.totalorder %s11, 1
    %p92 = scmp.ne.s32.totalorder %s87, %s89
    %p93 = scmp.eq.s32.totalorder %s11, 0
    %p94 = por %p92, %p93
    %p95 = scmp.ne.s32.totalorder %s87, %s89
    %p96 = scmp.eq.s32.totalorder %s16, 1
    %p97 = por %p95, %p96
    %p98 = scmp.ne.s32.totalorder %s89, %s90
    %p99 = scmp.eq.s32.totalorder %s16, 0
    %p100 = por %p98, %p99
    %p101 = scmp.ne.s32.totalorder %s89, %s90
    %p102 = scmp.eq.s32.totalorder %s17, 1
    %p103 = por %p101, %p102
    %p105 = scmp.ne.s32.totalorder %s90, %s104
    %p106 = scmp.eq.s32.totalorder %s17, 0
    %p107 = por %p105, %p106
    %s109 = sadd.s32 %s108, 1
    %p112 = scmp.eq.s32.totalorder %s11, 1
    %p113 = scmp.ne.s32.totalorder %s108, %s110
    %p114 = scmp.eq.s32.totalorder %s11, 0
    %p115 = por %p113, %p114
    %p116 = scmp.ne.s32.totalorder %s108, %s110
    %p117 = scmp.eq.s32.totalorder %s16, 1
    %p118 = por %p116, %p117
    %p119 = scmp.ne.s32.totalorder %s110, %s111
    %p120 = scmp.eq.s32.totalorder %s16, 0
    %p121 = por %p119, %p120
    %p122 = scmp.ne.s32.totalorder %s110, %s111
    %p123 = scmp.eq.s32.totalorder %s17, 1
    %p124 = por %p122, %p123
    %p126 = scmp.ne.s32.totalorder %s111, %s125
    %p127 = scmp.eq.s32.totalorder %s17, 0
    %p128 = por %p126, %p127
    %s129 = ssub.s32 %s11, %s18
    %p130 = scmp.eq.s32.totalorder %s129, 0
    %s132 = sadd.s32 %s131, 1
    %s133 = scalar_select %p130, %s131, %s132
    %p136 = pneg %p130
    %p137 = scmp.eq.s32.totalorder %s11, 1
    %p138 = por %p136, %p137
    %p139 = scmp.ne.s32.totalorder %s131, %s134
    %p140 = scmp.eq.s32.totalorder %s11, 0
    %p141 = por %p139, %p140
    %p142 = scmp.ne.s32.totalorder %s131, %s134
    %p143 = scmp.eq.s32.totalorder %s16, 1
    %p144 = por %p142, %p143
    %p145 = scmp.ne.s32.totalorder %s134, %s135
    %p146 = scmp.eq.s32.totalorder %s16, 0
    %p147 = por %p145, %p146
    %p148 = scmp.ne.s32.totalorder %s134, %s135
    %p149 = scmp.eq.s32.totalorder %s17, 1
    %p150 = por %p148, %p149
    %p152 = scmp.ne.s32.totalorder %s135, %s151
    %p153 = scmp.eq.s32.totalorder %s17, 0
    %p154 = por %p152, %p153
    %p155 = scmp.le.s32.totalorder 1, %s11
    %p156 = scmp.lt.s32.totalorder %s11, 3
    %p157 = pnand %p155, %p156
    %p158 = pneg %p157
    // Predicated region
    $region9: #{vit_forward.4} parent=5 // pred_check
      _
    $region10: #{vit_forward.4} parent=5 // pred_check_branch
      %160 = sbr.rel (%p157) target = $region12
    $region11: #{vit_forward.4} parent=5 // pred_region
      %s161 = ssub.s32 %s11, 1
      // Predicated region
      $region13: #{vit_forward.4} parent=11 // pred_check
        %p162 = pneg %p58
      $region14: #{vit_forward.4} parent=11 // pred_check_branch
        %164 = sbr.rel (%p162) target = $region16
      $region15: #{vit_forward.4} parent=11 // pred_region
        _
      $region16: #{vit_forward.4} parent=11 // pred_fallthru
        _
      // Predicated region
      $region17: #{vit_forward.4} parent=11 // pred_check
        %p165 = pneg %p79
      $region18: #{vit_forward.4} parent=11 // pred_check_branch
        %167 = sbr.rel (%p165) target = $region20
      $region19: #{vit_forward.4} parent=11 // pred_region
        _
      $region20: #{vit_forward.4} parent=11 // pred_fallthru
        _
      // Predicated region
      $region21: #{vit_forward.4} parent=11 // pred_check
        %p168 = pneg %p100
      $region22: #{vit_forward.4} parent=11 // pred_check_branch
        %170 = sbr.rel (%p168) target = $region24
      $region23: #{vit_forward.4} parent=11 // pred_region
        _
      $region24: #{vit_forward.4} parent=11 // pred_fallthru
        _
      // Predicated region
      $region25: #{vit_forward.4} parent=11 // pred_check
        %p171 = pneg %p121
      $region26: #{vit_forward.4} parent=11 // pred_check_branch
        %173 = sbr.rel (%p171) target = $region28
      $region27: #{vit_forward.4} parent=11 // pred_region
        _
      $region28: #{vit_forward.4} parent=11 // pred_fallthru
        _
    $region12: #{vit_forward.4} parent=5 // pred_fallthru
      _
    %p174 = scmp.lt.s32.totalorder %s11, 2
    // Predicated region
    $region29: #{vit_forward.4} parent=5 // pred_check
      %p175 = pneg %p174
    $region30: #{vit_forward.4} parent=5 // pred_check_branch
      %177 = sbr.rel (%p175) target = $region32
    $region31: #{vit_forward.4} parent=5 // pred_region
      // Predicated region
      $region33: #{vit_forward.4} parent=31 // pred_check
        %p178 = pneg %p31
      $region34: #{vit_forward.4} parent=31 // pred_check_branch
        %180 = sbr.rel (%p178) target = $region36
      $region35: #{vit_forward.4} parent=31 // pred_region
        %p181 = scmp.lt.s32.totalorder %s11, 1
        %s182 = scalar_select %p181, %s11, 1
        %s183 = smul.addr %s182, 2
        %s184 = smul.addr %s183, 8
        %s185 = scalar_lea.vmem %s0, %s184
      $region36: #{vit_forward.4} parent=31 // pred_fallthru
        _
    $region32: #{vit_forward.4} parent=5 // pred_fallthru
      _
    %p186 = scmp.le.s32.totalorder 1, %s11
    %p187 = scmp.lt.s32.totalorder %s11, 3
    %p188 = pnand %p186, %p187
    %p189 = pneg %p188
    // Predicated region
    $region37: #{vit_forward.4} parent=5 // pred_check
      _
    $region38: #{vit_forward.4} parent=5 // pred_check_branch
      %191 = sbr.rel (%p188) target = $region40
    $region39: #{vit_forward.4} parent=5 // pred_region
      %s192 = ssub.s32 %s11, 1
      %p193 = scmp.lt.s32.totalorder %s16, 1
      %s194 = scalar_select %p193, %s16, 1
      %s195 = smul.addr %s194, 2
      %s196 = smul.addr %s195, 8
      %s197 = scalar_lea.vmem %s0, %s196
      %p198 = pneg %p37
      %p199 = pneg %p34
      %p200 = pneg %p58
      %p201 = pneg %p55
      %p202 = pneg %p79
      %p203 = pneg %p76
      %p204 = pneg %p100
      %p205 = pneg %p97
      %p206 = pneg %p121
      %p207 = pneg %p118
      %p208 = pneg %p147
      %p209 = pneg %p144
      %p210 = scmp.lt.s32.totalorder %s16, 1
      %s211 = scalar_select %p210, %s16, 1
      %s212 = smul.addr %s211, 8
      %s213 = scalar_lea.vmem %s5, %s212
      %p214 = scmp.lt.s32.totalorder %s16, 1
      %s215 = scalar_select %p214, %s16, 1
      %s216 = smul.addr %s215, 2
      %s217 = smul.addr %s216, 8
      %s218 = scalar_lea.vmem %s0, %s217
      %p219 = scmp.lt.s32.totalorder %s16, 1
      %s220 = scalar_select %p219, %s16, 1
      %s221 = smul.addr %s220, 8
      %s222 = scalar_lea.vmem %s5, %s221
      %v224 = vld [vmem:[%s218] sm:$0x1f]
      %v225 = vld [vmem:[%s218 + $0x8] sm:$0x1f]
      %v226 = vpack.c.bf16 %v224, %v224
      %v227 = vpack.c.bf16 %v225, %v225
      %v228 = vld [vmem:[%s1] sm:$0xf]
      %v229 = vld [vmem:[%s1 + $0x4] sm:$0xf]
      %v230 = vld [vmem:[%s1 + $0x8] sm:$0xf]
      %v231 = vld [vmem:[%s1 + $0xc] sm:$0xf]
      %v232 = vld [vmem:[%s1 + $0x10] sm:$0xf]
      %v233 = vld [vmem:[%s1 + $0x14] sm:$0xf]
      %v234 = vld [vmem:[%s1 + $0x18] sm:$0xf]
      %v235 = vld [vmem:[%s1 + $0x1c] sm:$0xf]
      %v236 = vld [vmem:[%s1 + $0x20] sm:$0xf]
      %v237 = vld [vmem:[%s1 + $0x24] sm:$0xf]
      %v238 = vld [vmem:[%s1 + $0x28] sm:$0xf]
      %v239 = vld [vmem:[%s1 + $0x2c] sm:$0xf]
      %v240 = vld [vmem:[%s1 + $0x30] sm:$0xf]
      %v241 = vld [vmem:[%s1 + $0x34] sm:$0xf]
      %v242 = vld [vmem:[%s1 + $0x38] sm:$0xf]
      %v243 = vld [vmem:[%s1 + $0x3c] sm:$0xf]
      %v244 = vld [vmem:[%s1 + $0x40] sm:$0xf]
      %v245 = vld [vmem:[%s1 + $0x44] sm:$0xf]
      %v246 = vld [vmem:[%s1 + $0x48] sm:$0xf]
      %v247 = vld [vmem:[%s1 + $0x4c] sm:$0xf]
      %v248 = vld [vmem:[%s1 + $0x50] sm:$0xf]
      %v249 = vld [vmem:[%s1 + $0x54] sm:$0xf]
      %v250 = vld [vmem:[%s1 + $0x58] sm:$0xf]
      %v251 = vld [vmem:[%s1 + $0x5c] sm:$0xf]
      %v252 = vld [vmem:[%s1 + $0x60] sm:$0xf]
      %v253 = vld [vmem:[%s1 + $0x64] sm:$0xf]
      %v254 = vld [vmem:[%s1 + $0x68] sm:$0xf]
      %v255 = vld [vmem:[%s1 + $0x6c] sm:$0xf]
      %v256 = vld [vmem:[%s1 + $0x70] sm:$0xf]
      %v257 = vld [vmem:[%s1 + $0x74] sm:$0xf]
      %v258 = vld [vmem:[%s1 + $0x78] sm:$0xf]
      %v259 = vld [vmem:[%s1 + $0x7c] sm:$0xf]
      %v260 = vld [vmem:[%s2] sm:$0x1]
      %v262 = vlaneseq
      %v263 = vshrl.u32 %v262, 7
      %v264 = vsub.s32 0, %v263
      %v265 = vrot.slane %v260, %v264
      %v299 = vunpack.c.l.b16 %v228
      %v300 = vunpack.c.l.b16 %v229
      %v301 = vunpack.c.l.b16 %v230
      %v302 = vunpack.c.l.b16 %v231
      %v303 = vunpack.c.l.b16 %v232
      %v304 = vunpack.c.l.b16 %v233
      %v305 = vunpack.c.l.b16 %v234
      %v306 = vunpack.c.l.b16 %v235
      %v307 = vunpack.c.l.b16 %v236
      %v308 = vunpack.c.l.b16 %v237
      %v309 = vunpack.c.l.b16 %v238
      %v310 = vunpack.c.l.b16 %v239
      %v311 = vunpack.c.l.b16 %v240
      %v312 = vunpack.c.l.b16 %v241
      %v313 = vunpack.c.l.b16 %v242
      %v314 = vunpack.c.l.b16 %v243
      %v315 = vunpack.c.l.b16 %v244
      %v316 = vunpack.c.l.b16 %v245
      %v317 = vunpack.c.l.b16 %v246
      %v318 = vunpack.c.l.b16 %v247
      %v319 = vunpack.c.l.b16 %v248
      %v320 = vunpack.c.l.b16 %v249
      %v321 = vunpack.c.l.b16 %v250
      %v322 = vunpack.c.l.b16 %v251
      %v323 = vunpack.c.l.b16 %v252
      %v324 = vunpack.c.l.b16 %v253
      %v325 = vunpack.c.l.b16 %v254
      %v326 = vunpack.c.l.b16 %v255
      %v327 = vunpack.c.l.b16 %v256
      %v328 = vunpack.c.l.b16 %v257
      %v329 = vunpack.c.l.b16 %v258
      %v330 = vunpack.c.l.b16 %v259
      %v331 = vpack.c.b16 %v300, %v299
      %v332 = vpack.c.b16 %v302, %v301
      %v333 = vpack.c.b16 %v304, %v303
      %v334 = vpack.c.b16 %v306, %v305
      %v335 = vpack.c.b16 %v308, %v307
      %v336 = vpack.c.b16 %v310, %v309
      %v337 = vpack.c.b16 %v312, %v311
      %v338 = vpack.c.b16 %v314, %v313
      %v339 = vpack.c.b16 %v316, %v315
      %v340 = vpack.c.b16 %v318, %v317
      %v341 = vpack.c.b16 %v320, %v319
      %v342 = vpack.c.b16 %v322, %v321
      %v343 = vpack.c.b16 %v324, %v323
      %v344 = vpack.c.b16 %v326, %v325
      %v345 = vpack.c.b16 %v328, %v327
      %v346 = vpack.c.b16 %v330, %v329
      %363 = vmatprep.subr.bf16.mxu0 0
      %364 = vmatpush1.bf16.msra.mxu0 %v331
      %365 = vmatprep.subr.bf16.mxu0 0
      %366 = vmatpush1.bf16.msra.mxu0 %v332
      %367 = vmatprep.subr.bf16.mxu0 0
      %368 = vmatpush1.bf16.msra.mxu0 %v333
      %369 = vmatprep.subr.bf16.mxu0 0
      %370 = vmatpush1.bf16.msra.mxu0 %v334
      %371 = vmatprep.subr.bf16.mxu0 0
      %372 = vmatpush1.bf16.msra.mxu0 %v335
      %373 = vmatprep.subr.bf16.mxu0 0
      %374 = vmatpush1.bf16.msra.mxu0 %v336
      %375 = vmatprep.subr.bf16.mxu0 0
      %376 = vmatpush1.bf16.msra.mxu0 %v337
      %377 = vmatprep.subr.bf16.mxu0 0
      %378 = vmatpush1.bf16.msra.mxu0 %v338
      %379 = vmatprep.subr.bf16.mxu0 0
      %380 = vmatpush1.bf16.msra.mxu0 %v339
      %381 = vmatprep.subr.bf16.mxu0 0
      %382 = vmatpush1.bf16.msra.mxu0 %v340
      %383 = vmatprep.subr.bf16.mxu0 0
      %384 = vmatpush1.bf16.msra.mxu0 %v341
      %385 = vmatprep.subr.bf16.mxu0 0
      %386 = vmatpush1.bf16.msra.mxu0 %v342
      %387 = vmatprep.subr.bf16.mxu0 0
      %388 = vmatpush1.bf16.msra.mxu0 %v343
      %389 = vmatprep.subr.bf16.mxu0 0
      %390 = vmatpush1.bf16.msra.mxu0 %v344
      %391 = vmatprep.subr.bf16.mxu0 0
      %392 = vmatpush1.bf16.msra.mxu0 %v345
      %393 = vmatprep.subr.bf16.mxu0 0
      %394 = vmatpush1.bf16.msra.mxu0 %v346
      %395 = vmatprep.mubr.bf16.mxu0 %v227
      %396 = vmatmul.mubr.bf16.gmra.mrb[0].mxu0 %v226
      %v397 = vpop.f32.mrb[0].mxu0
      %v398 = vadd.f32 %v265, %v397
      %v399 = vpop.f32.mrb[0].mxu0
      %v400 = vpop.f32.mrb[0].mxu0
      %v401 = vpop.f32.mrb[0].mxu0
      %402 = vdwg.mxu0
      %v403 = vlaneseq
      %v404 = vshrl.u32 %v403, 7
      %vm405 = vcmp.eq.s32.totalorder %v404, 0
      %v406 = vld [vmem:[%s3] sm:$0x1]
      %v408 = vlaneseq
      %v409 = vshrl.u32 %v408, 7
      %v410 = vsub.s32 0, %v409
      %v411 = vrot.slane %v406, %v410
      %v413 = vsel %vm405, %v411, %v398
      %v414 = vld [vmem:[%s4] sm:$0x1f]
      %v415 = vadd.f32 %v413, %v414
      %vm416 = vcmask 258048
      %417 = vst.msk [vmem:[%s222] sm:$0x1f] %vm416, %v415
      %p418 = scmp.lt.s32.totalorder %s16, 1
      %s419 = scalar_select %p418, %s16, 1
      %s420 = smul.addr %s419, 8
      %s421 = scalar_lea.vmem %s5, %s420
      // Predicated region
      $region41: #{vit_forward.4} parent=39 // pred_check
        %p422 = pneg %p144
      $region42: #{vit_forward.4} parent=39 // pred_check_branch
        %424 = sbr.rel (%p422) target = $region44
      $region43: #{vit_forward.4} parent=39 // pred_region
        _
      $region44: #{vit_forward.4} parent=39 // pred_fallthru
        _
    $region40: #{vit_forward.4} parent=5 // pred_fallthru
      _
    %p425 = scmp.le.s32.totalorder 2, %s11
    // Predicated region
    $region45: #{vit_forward.4} parent=5 // pred_check
      %p426 = pneg %p425
    $region46: #{vit_forward.4} parent=5 // pred_check_branch
      %428 = sbr.rel (%p426) target = $region48
    $region47: #{vit_forward.4} parent=5 // pred_region
      %s429 = ssub.s32 %s11, 2
      // Predicated region
      $region49: #{vit_forward.4} parent=47 // pred_check
        %p430 = pneg %p150
      $region50: #{vit_forward.4} parent=47 // pred_check_branch
        %432 = sbr.rel (%p430) target = $region52
      $region51: #{vit_forward.4} parent=47 // pred_region
        %p433 = scmp.lt.s32.totalorder %s17, 1
        %s434 = scalar_select %p433, %s17, 1
        %s435 = smul.addr %s434, 8
        %s436 = scalar_lea.vmem %s5, %s435
      $region52: #{vit_forward.4} parent=47 // pred_fallthru
        _
    $region48: #{vit_forward.4} parent=5 // pred_fallthru
      _
  $region6: #{vit_forward.4} parent=0 // loop_footer
    %s15 = sadd.s32 1, %s11
  $region7: #{vit_forward.4} parent=0 // loop_footer_branch
    %10 = sbr.rel target = $region3
  $region8: #{vit_forward.4} parent=0 // loop_exit
    _

// kernel: vit_forward.5
$region0: #{vit_forward.5}
  #allocation0 [shape = 'u32[]', space=smem, size = 0x4, offset = 0x4, fixed_abs, tag = 'smem constant byte address 0x4 - core index']
  #allocation1 [shape = 'u32[144,128]{1,0:T(1,128)}', space=vmem, size = 0x12000, scoped, tag = 'internal scratch']
  %s0 = inlined_call_operand.vmem [shape: f32[2,5,32], index: 0, kind: input, shape index: {}]
  %s1 = inlined_call_operand.vmem [shape: f32[1,32], index: 1, kind: input, shape index: {}]
  %s2 = inlined_call_operand.vmem [shape: f32[1,32], index: 2, kind: input, shape index: {}]
  %s3 = inlined_call_operand.vmem [shape: bf16[32,96], index: 3, kind: input, shape index: {}]
  %s4 = inlined_call_operand.vmem [shape: f32[1,96], index: 4, kind: input, shape index: {}]
  %s5 = inlined_call_operand.vmem [shape: bf16[32,32], index: 5, kind: input, shape index: {}]
  %s6 = inlined_call_operand.vmem [shape: f32[1,32], index: 6, kind: input, shape index: {}]
  %s7 = inlined_call_operand.vmem [shape: f32[1,32], index: 7, kind: input, shape index: {}]
  %s8 = inlined_call_operand.vmem [shape: f32[1,32], index: 8, kind: input, shape index: {}]
  %s9 = inlined_call_operand.vmem [shape: bf16[32,64], index: 9, kind: input, shape index: {}]
  %s10 = inlined_call_operand.vmem [shape: f32[1,64], index: 10, kind: input, shape index: {}]
  %s11 = inlined_call_operand.vmem [shape: bf16[64,32], index: 11, kind: input, shape index: {}]
  %s12 = inlined_call_operand.vmem [shape: f32[1,32], index: 12, kind: input, shape index: {}]
  %s13 = inlined_call_operand.vmem [shape: f32[2,5,32], index: 13, kind: output, shape index: {0}]
  %s14 = inlined_call_operand.vmem [shape: f32[2,5,5], index: 14, kind: output, shape index: {1}]
  %15 = xla_tuple %s13, %s14
  %s16 = sld [smem:[#allocation0]]
  $region93: #{vit_forward.5} parent=0
    _
  %s18 = ssub.s32 1, %s16
  %s19 = scalar_select 0, %s18, %s16
  loop: start=0, step=1, limit=4
  $region2: #{vit_forward.5} parent=0 // loop_pre_header
    _
  $region3: #{vit_forward.5} parent=0 // loop_header
    %s21 = sphi 0, %s25
    %p22 = scmp.ge.s32.totalorder %s21, 4
    %s31 = sphi 0, %s33
    %s34 = sphi 0, %s31
    %s35 = sphi 0, %s34
    %s51 = sphi 0, %s35
    %s55 = sphi 0, %s55
    %s57 = sphi 0, %s55
    %s58 = sphi 0, %s57
    %s72 = sphi 0, %s58
    %s76 = sphi 0, %s76
    %s78 = sphi 0, %s76
    %s79 = sphi 0, %s78
    %s93 = sphi 0, %s79
    %s97 = sphi 0, %s97
    %s99 = sphi 0, %s97
    %s100 = sphi 0, %s99
    %s114 = sphi 0, %s100
    %s118 = sphi 0, %s118
    %s120 = sphi 0, %s118
    %s121 = sphi 0, %s120
    %s135 = sphi 0, %s121
    %s139 = sphi 0, %s139
    %s141 = sphi 0, %s139
    %s142 = sphi 0, %s141
    %s156 = sphi 0, %s142
    %s160 = sphi 0, %s160
    %s162 = sphi 0, %s160
    %s163 = sphi 0, %s162
    %s177 = sphi 0, %s163
    %s181 = sphi 0, %s181
    %s183 = sphi 0, %s181
    %s184 = sphi 0, %s183
    %s198 = sphi 0, %s184
    %s202 = sphi 0, %s202
    %s204 = sphi 0, %s202
    %s205 = sphi 0, %s204
    %s219 = sphi 0, %s205
    %s223 = sphi 0, %s223
    %s225 = sphi 0, %s223
    %s226 = sphi 0, %s225
    %s240 = sphi 0, %s226
    %s244 = sphi 0, %s244
    %s246 = sphi 0, %s244
    %s247 = sphi 0, %s246
    %s261 = sphi 0, %s247
    %s265 = sphi 0, %s265
    %s267 = sphi 0, %s265
    %s268 = sphi 0, %s267
    %s282 = sphi 0, %s268
    %s286 = sphi 0, %s286
    %s288 = sphi 0, %s286
    %s289 = sphi 0, %s288
    %s303 = sphi 0, %s289
    %s309 = sphi 0, %s311
    %s312 = sphi 0, %s309
    %s313 = sphi 0, %s312
    %s329 = sphi 0, %s313
    %s335 = sphi 0, %s337
    %s338 = sphi 0, %s335
    %s339 = sphi 0, %s338
    %s355 = sphi 0, %s339
  $region4: #{vit_forward.5} parent=0 // loop_header_branch
    %24 = sbr.rel (%p22) target = $region8
  $region5: #{vit_forward.5} parent=0 // loop_body
    %s26 = ssub.s32 %s21, 1
    %s27 = ssub.s32 %s21, 2
    %s28 = sadd.s32 %s21, 1
    %s29 = ssub.s32 %s21, %s28
    %p30 = scmp.eq.s32.totalorder %s29, 0
    %s32 = sadd.s32 %s31, 1
    %s33 = scalar_select %p30, %s31, %s32
    %p36 = pneg %p30
    %p37 = scmp.eq.s32.totalorder %s21, 1
    %p38 = por %p36, %p37
    %p39 = scmp.ne.s32.totalorder %s31, %s34
    %p40 = scmp.eq.s32.totalorder %s21, 0
    %p41 = por %p39, %p40
    %p42 = scmp.ne.s32.totalorder %s31, %s34
    %p43 = scmp.eq.s32.totalorder %s26, 1
    %p44 = por %p42, %p43
    %p45 = scmp.ne.s32.totalorder %s34, %s35
    %p46 = scmp.eq.s32.totalorder %s26, 0
    %p47 = por %p45, %p46
    %p48 = scmp.ne.s32.totalorder %s34, %s35
    %p49 = scmp.eq.s32.totalorder %s27, 1
    %p50 = por %p48, %p49
    %p52 = scmp.ne.s32.totalorder %s35, %s51
    %p53 = scmp.eq.s32.totalorder %s27, 0
    %p54 = por %p52, %p53
    %s56 = sadd.s32 %s55, 1
    %p59 = scmp.eq.s32.totalorder %s21, 1
    %p60 = scmp.ne.s32.totalorder %s55, %s57
    %p61 = scmp.eq.s32.totalorder %s21, 0
    %p62 = por %p60, %p61
    %p63 = scmp.ne.s32.totalorder %s55, %s57
    %p64 = scmp.eq.s32.totalorder %s26, 1
    %p65 = por %p63, %p64
    %p66 = scmp.ne.s32.totalorder %s57, %s58
    %p67 = scmp.eq.s32.totalorder %s26, 0
    %p68 = por %p66, %p67
    %p69 = scmp.ne.s32.totalorder %s57, %s58
    %p70 = scmp.eq.s32.totalorder %s27, 1
    %p71 = por %p69, %p70
    %p73 = scmp.ne.s32.totalorder %s58, %s72
    %p74 = scmp.eq.s32.totalorder %s27, 0
    %p75 = por %p73, %p74
    %s77 = sadd.s32 %s76, 1
    %p80 = scmp.eq.s32.totalorder %s21, 1
    %p81 = scmp.ne.s32.totalorder %s76, %s78
    %p82 = scmp.eq.s32.totalorder %s21, 0
    %p83 = por %p81, %p82
    %p84 = scmp.ne.s32.totalorder %s76, %s78
    %p85 = scmp.eq.s32.totalorder %s26, 1
    %p86 = por %p84, %p85
    %p87 = scmp.ne.s32.totalorder %s78, %s79
    %p88 = scmp.eq.s32.totalorder %s26, 0
    %p89 = por %p87, %p88
    %p90 = scmp.ne.s32.totalorder %s78, %s79
    %p91 = scmp.eq.s32.totalorder %s27, 1
    %p92 = por %p90, %p91
    %p94 = scmp.ne.s32.totalorder %s79, %s93
    %p95 = scmp.eq.s32.totalorder %s27, 0
    %p96 = por %p94, %p95
    %s98 = sadd.s32 %s97, 1
    %p101 = scmp.eq.s32.totalorder %s21, 1
    %p102 = scmp.ne.s32.totalorder %s97, %s99
    %p103 = scmp.eq.s32.totalorder %s21, 0
    %p104 = por %p102, %p103
    %p105 = scmp.ne.s32.totalorder %s97, %s99
    %p106 = scmp.eq.s32.totalorder %s26, 1
    %p107 = por %p105, %p106
    %p108 = scmp.ne.s32.totalorder %s99, %s100
    %p109 = scmp.eq.s32.totalorder %s26, 0
    %p110 = por %p108, %p109
    %p111 = scmp.ne.s32.totalorder %s99, %s100
    %p112 = scmp.eq.s32.totalorder %s27, 1
    %p113 = por %p111, %p112
    %p115 = scmp.ne.s32.totalorder %s100, %s114
    %p116 = scmp.eq.s32.totalorder %s27, 0
    %p117 = por %p115, %p116
    %s119 = sadd.s32 %s118, 1
    %p122 = scmp.eq.s32.totalorder %s21, 1
    %p123 = scmp.ne.s32.totalorder %s118, %s120
    %p124 = scmp.eq.s32.totalorder %s21, 0
    %p125 = por %p123, %p124
    %p126 = scmp.ne.s32.totalorder %s118, %s120
    %p127 = scmp.eq.s32.totalorder %s26, 1
    %p128 = por %p126, %p127
    %p129 = scmp.ne.s32.totalorder %s120, %s121
    %p130 = scmp.eq.s32.totalorder %s26, 0
    %p131 = por %p129, %p130
    %p132 = scmp.ne.s32.totalorder %s120, %s121
    %p133 = scmp.eq.s32.totalorder %s27, 1
    %p134 = por %p132, %p133
    %p136 = scmp.ne.s32.totalorder %s121, %s135
    %p137 = scmp.eq.s32.totalorder %s27, 0
    %p138 = por %p136, %p137
    %s140 = sadd.s32 %s139, 1
    %p143 = scmp.eq.s32.totalorder %s21, 1
    %p144 = scmp.ne.s32.totalorder %s139, %s141
    %p145 = scmp.eq.s32.totalorder %s21, 0
    %p146 = por %p144, %p145
    %p147 = scmp.ne.s32.totalorder %s139, %s141
    %p148 = scmp.eq.s32.totalorder %s26, 1
    %p149 = por %p147, %p148
    %p150 = scmp.ne.s32.totalorder %s141, %s142
    %p151 = scmp.eq.s32.totalorder %s26, 0
    %p152 = por %p150, %p151
    %p153 = scmp.ne.s32.totalorder %s141, %s142
    %p154 = scmp.eq.s32.totalorder %s27, 1
    %p155 = por %p153, %p154
    %p157 = scmp.ne.s32.totalorder %s142, %s156
    %p158 = scmp.eq.s32.totalorder %s27, 0
    %p159 = por %p157, %p158
    %s161 = sadd.s32 %s160, 1
    %p164 = scmp.eq.s32.totalorder %s21, 1
    %p165 = scmp.ne.s32.totalorder %s160, %s162
    %p166 = scmp.eq.s32.totalorder %s21, 0
    %p167 = por %p165, %p166
    %p168 = scmp.ne.s32.totalorder %s160, %s162
    %p169 = scmp.eq.s32.totalorder %s26, 1
    %p170 = por %p168, %p169
    %p171 = scmp.ne.s32.totalorder %s162, %s163
    %p172 = scmp.eq.s32.totalorder %s26, 0
    %p173 = por %p171, %p172
    %p174 = scmp.ne.s32.totalorder %s162, %s163
    %p175 = scmp.eq.s32.totalorder %s27, 1
    %p176 = por %p174, %p175
    %p178 = scmp.ne.s32.totalorder %s163, %s177
    %p179 = scmp.eq.s32.totalorder %s27, 0
    %p180 = por %p178, %p179
    %s182 = sadd.s32 %s181, 1
    %p185 = scmp.eq.s32.totalorder %s21, 1
    %p186 = scmp.ne.s32.totalorder %s181, %s183
    %p187 = scmp.eq.s32.totalorder %s21, 0
    %p188 = por %p186, %p187
    %p189 = scmp.ne.s32.totalorder %s181, %s183
    %p190 = scmp.eq.s32.totalorder %s26, 1
    %p191 = por %p189, %p190
    %p192 = scmp.ne.s32.totalorder %s183, %s184
    %p193 = scmp.eq.s32.totalorder %s26, 0
    %p194 = por %p192, %p193
    %p195 = scmp.ne.s32.totalorder %s183, %s184
    %p196 = scmp.eq.s32.totalorder %s27, 1
    %p197 = por %p195, %p196
    %p199 = scmp.ne.s32.totalorder %s184, %s198
    %p200 = scmp.eq.s32.totalorder %s27, 0
    %p201 = por %p199, %p200
    %s203 = sadd.s32 %s202, 1
    %p206 = scmp.eq.s32.totalorder %s21, 1
    %p207 = scmp.ne.s32.totalorder %s202, %s204
    %p208 = scmp.eq.s32.totalorder %s21, 0
    %p209 = por %p207, %p208
    %p210 = scmp.ne.s32.totalorder %s202, %s204
    %p211 = scmp.eq.s32.totalorder %s26, 1
    %p212 = por %p210, %p211
    %p213 = scmp.ne.s32.totalorder %s204, %s205
    %p214 = scmp.eq.s32.totalorder %s26, 0
    %p215 = por %p213, %p214
    %p216 = scmp.ne.s32.totalorder %s204, %s205
    %p217 = scmp.eq.s32.totalorder %s27, 1
    %p218 = por %p216, %p217
    %p220 = scmp.ne.s32.totalorder %s205, %s219
    %p221 = scmp.eq.s32.totalorder %s27, 0
    %p222 = por %p220, %p221
    %s224 = sadd.s32 %s223, 1
    %p227 = scmp.eq.s32.totalorder %s21, 1
    %p228 = scmp.ne.s32.totalorder %s223, %s225
    %p229 = scmp.eq.s32.totalorder %s21, 0
    %p230 = por %p228, %p229
    %p231 = scmp.ne.s32.totalorder %s223, %s225
    %p232 = scmp.eq.s32.totalorder %s26, 1
    %p233 = por %p231, %p232
    %p234 = scmp.ne.s32.totalorder %s225, %s226
    %p235 = scmp.eq.s32.totalorder %s26, 0
    %p236 = por %p234, %p235
    %p237 = scmp.ne.s32.totalorder %s225, %s226
    %p238 = scmp.eq.s32.totalorder %s27, 1
    %p239 = por %p237, %p238
    %p241 = scmp.ne.s32.totalorder %s226, %s240
    %p242 = scmp.eq.s32.totalorder %s27, 0
    %p243 = por %p241, %p242
    %s245 = sadd.s32 %s244, 1
    %p248 = scmp.eq.s32.totalorder %s21, 1
    %p249 = scmp.ne.s32.totalorder %s244, %s246
    %p250 = scmp.eq.s32.totalorder %s21, 0
    %p251 = por %p249, %p250
    %p252 = scmp.ne.s32.totalorder %s244, %s246
    %p253 = scmp.eq.s32.totalorder %s26, 1
    %p254 = por %p252, %p253
    %p255 = scmp.ne.s32.totalorder %s246, %s247
    %p256 = scmp.eq.s32.totalorder %s26, 0
    %p257 = por %p255, %p256
    %p258 = scmp.ne.s32.totalorder %s246, %s247
    %p259 = scmp.eq.s32.totalorder %s27, 1
    %p260 = por %p258, %p259
    %p262 = scmp.ne.s32.totalorder %s247, %s261
    %p263 = scmp.eq.s32.totalorder %s27, 0
    %p264 = por %p262, %p263
    %s266 = sadd.s32 %s265, 1
    %p269 = scmp.eq.s32.totalorder %s21, 1
    %p270 = scmp.ne.s32.totalorder %s265, %s267
    %p271 = scmp.eq.s32.totalorder %s21, 0
    %p272 = por %p270, %p271
    %p273 = scmp.ne.s32.totalorder %s265, %s267
    %p274 = scmp.eq.s32.totalorder %s26, 1
    %p275 = por %p273, %p274
    %p276 = scmp.ne.s32.totalorder %s267, %s268
    %p277 = scmp.eq.s32.totalorder %s26, 0
    %p278 = por %p276, %p277
    %p279 = scmp.ne.s32.totalorder %s267, %s268
    %p280 = scmp.eq.s32.totalorder %s27, 1
    %p281 = por %p279, %p280
    %p283 = scmp.ne.s32.totalorder %s268, %s282
    %p284 = scmp.eq.s32.totalorder %s27, 0
    %p285 = por %p283, %p284
    %s287 = sadd.s32 %s286, 1
    %p290 = scmp.eq.s32.totalorder %s21, 1
    %p291 = scmp.ne.s32.totalorder %s286, %s288
    %p292 = scmp.eq.s32.totalorder %s21, 0
    %p293 = por %p291, %p292
    %p294 = scmp.ne.s32.totalorder %s286, %s288
    %p295 = scmp.eq.s32.totalorder %s26, 1
    %p296 = por %p294, %p295
    %p297 = scmp.ne.s32.totalorder %s288, %s289
    %p298 = scmp.eq.s32.totalorder %s26, 0
    %p299 = por %p297, %p298
    %p300 = scmp.ne.s32.totalorder %s288, %s289
    %p301 = scmp.eq.s32.totalorder %s27, 1
    %p302 = por %p300, %p301
    %p304 = scmp.ne.s32.totalorder %s289, %s303
    %p305 = scmp.eq.s32.totalorder %s27, 0
    %p306 = por %p304, %p305
    %s307 = ssub.s32 %s21, %s28
    %p308 = scmp.eq.s32.totalorder %s307, 0
    %s310 = sadd.s32 %s309, 1
    %s311 = scalar_select %p308, %s309, %s310
    %p314 = pneg %p308
    %p315 = scmp.eq.s32.totalorder %s21, 1
    %p316 = por %p314, %p315
    %p317 = scmp.ne.s32.totalorder %s309, %s312
    %p318 = scmp.eq.s32.totalorder %s21, 0
    %p319 = por %p317, %p318
    %p320 = scmp.ne.s32.totalorder %s309, %s312
    %p321 = scmp.eq.s32.totalorder %s26, 1
    %p322 = por %p320, %p321
    %p323 = scmp.ne.s32.totalorder %s312, %s313
    %p324 = scmp.eq.s32.totalorder %s26, 0
    %p325 = por %p323, %p324
    %p326 = scmp.ne.s32.totalorder %s312, %s313
    %p327 = scmp.eq.s32.totalorder %s27, 1
    %p328 = por %p326, %p327
    %p330 = scmp.ne.s32.totalorder %s313, %s329
    %p331 = scmp.eq.s32.totalorder %s27, 0
    %p332 = por %p330, %p331
    %s333 = ssub.s32 %s21, %s28
    %p334 = scmp.eq.s32.totalorder %s333, 0
    %s336 = sadd.s32 %s335, 1
    %s337 = scalar_select %p334, %s335, %s336
    %p340 = pneg %p334
    %p341 = scmp.eq.s32.totalorder %s21, 1
    %p342 = por %p340, %p341
    %p343 = scmp.ne.s32.totalorder %s335, %s338
    %p344 = scmp.eq.s32.totalorder %s21, 0
    %p345 = por %p343, %p344
    %p346 = scmp.ne.s32.totalorder %s335, %s338
    %p347 = scmp.eq.s32.totalorder %s26, 1
    %p348 = por %p346, %p347
    %p349 = scmp.ne.s32.totalorder %s338, %s339
    %p350 = scmp.eq.s32.totalorder %s26, 0
    %p351 = por %p349, %p350
    %p352 = scmp.ne.s32.totalorder %s338, %s339
    %p353 = scmp.eq.s32.totalorder %s27, 1
    %p354 = por %p352, %p353
    %p356 = scmp.ne.s32.totalorder %s339, %s355
    %p357 = scmp.eq.s32.totalorder %s27, 0
    %p358 = por %p356, %p357
    %p359 = scmp.le.s32.totalorder 1, %s21
    %p360 = scmp.lt.s32.totalorder %s21, 3
    %p361 = pnand %p359, %p360
    %p362 = pneg %p361
    // Predicated region
    $region9: #{vit_forward.5} parent=5 // pred_check
      _
    $region10: #{vit_forward.5} parent=5 // pred_check_branch
      %364 = sbr.rel (%p361) target = $region12
    $region11: #{vit_forward.5} parent=5 // pred_region
      %s365 = ssub.s32 %s21, 1
      // Predicated region
      $region13: #{vit_forward.5} parent=11 // pred_check
        %p366 = pneg %p68
      $region14: #{vit_forward.5} parent=11 // pred_check_branch
        %368 = sbr.rel (%p366) target = $region16
      $region15: #{vit_forward.5} parent=11 // pred_region
        _
      $region16: #{vit_forward.5} parent=11 // pred_fallthru
        _
      // Predicated region
      $region17: #{vit_forward.5} parent=11 // pred_check
        %p369 = pneg %p89
      $region18: #{vit_forward.5} parent=11 // pred_check_branch
        %371 = sbr.rel (%p369) target = $region20
      $region19: #{vit_forward.5} parent=11 // pred_region
        _
      $region20: #{vit_forward.5} parent=11 // pred_fallthru
        _
      // Predicated region
      $region21: #{vit_forward.5} parent=11 // pred_check
        %p372 = pneg %p110
      $region22: #{vit_forward.5} parent=11 // pred_check_branch
        %374 = sbr.rel (%p372) target = $region24
      $region23: #{vit_forward.5} parent=11 // pred_region
        _
      $region24: #{vit_forward.5} parent=11 // pred_fallthru
        _
      // Predicated region
      $region25: #{vit_forward.5} parent=11 // pred_check
        %p375 = pneg %p131
      $region26: #{vit_forward.5} parent=11 // pred_check_branch
        %377 = sbr.rel (%p375) target = $region28
      $region27: #{vit_forward.5} parent=11 // pred_region
        _
      $region28: #{vit_forward.5} parent=11 // pred_fallthru
        _
      // Predicated region
      $region29: #{vit_forward.5} parent=11 // pred_check
        %p378 = pneg %p152
      $region30: #{vit_forward.5} parent=11 // pred_check_branch
        %380 = sbr.rel (%p378) target = $region32
      $region31: #{vit_forward.5} parent=11 // pred_region
        _
      $region32: #{vit_forward.5} parent=11 // pred_fallthru
        _
      // Predicated region
      $region33: #{vit_forward.5} parent=11 // pred_check
        %p381 = pneg %p173
      $region34: #{vit_forward.5} parent=11 // pred_check_branch
        %383 = sbr.rel (%p381) target = $region36
      $region35: #{vit_forward.5} parent=11 // pred_region
        _
      $region36: #{vit_forward.5} parent=11 // pred_fallthru
        _
      // Predicated region
      $region37: #{vit_forward.5} parent=11 // pred_check
        %p384 = pneg %p194
      $region38: #{vit_forward.5} parent=11 // pred_check_branch
        %386 = sbr.rel (%p384) target = $region40
      $region39: #{vit_forward.5} parent=11 // pred_region
        _
      $region40: #{vit_forward.5} parent=11 // pred_fallthru
        _
      // Predicated region
      $region41: #{vit_forward.5} parent=11 // pred_check
        %p387 = pneg %p215
      $region42: #{vit_forward.5} parent=11 // pred_check_branch
        %389 = sbr.rel (%p387) target = $region44
      $region43: #{vit_forward.5} parent=11 // pred_region
        _
      $region44: #{vit_forward.5} parent=11 // pred_fallthru
        _
      // Predicated region
      $region45: #{vit_forward.5} parent=11 // pred_check
        %p390 = pneg %p236
      $region46: #{vit_forward.5} parent=11 // pred_check_branch
        %392 = sbr.rel (%p390) target = $region48
      $region47: #{vit_forward.5} parent=11 // pred_region
        _
      $region48: #{vit_forward.5} parent=11 // pred_fallthru
        _
      // Predicated region
      $region49: #{vit_forward.5} parent=11 // pred_check
        %p393 = pneg %p257
      $region50: #{vit_forward.5} parent=11 // pred_check_branch
        %395 = sbr.rel (%p393) target = $region52
      $region51: #{vit_forward.5} parent=11 // pred_region
        _
      $region52: #{vit_forward.5} parent=11 // pred_fallthru
        _
      // Predicated region
      $region53: #{vit_forward.5} parent=11 // pred_check
        %p396 = pneg %p278
      $region54: #{vit_forward.5} parent=11 // pred_check_branch
        %398 = sbr.rel (%p396) target = $region56
      $region55: #{vit_forward.5} parent=11 // pred_region
        _
      $region56: #{vit_forward.5} parent=11 // pred_fallthru
        _
      // Predicated region
      $region57: #{vit_forward.5} parent=11 // pred_check
        %p399 = pneg %p299
      $region58: #{vit_forward.5} parent=11 // pred_check_branch
        %401 = sbr.rel (%p399) target = $region60
      $region59: #{vit_forward.5} parent=11 // pred_region
        _
      $region60: #{vit_forward.5} parent=11 // pred_fallthru
        _
    $region12: #{vit_forward.5} parent=5 // pred_fallthru
      _
    %p402 = scmp.lt.s32.totalorder %s21, 2
    // Predicated region
    $region61: #{vit_forward.5} parent=5 // pred_check
      %p403 = pneg %p402
    $region62: #{vit_forward.5} parent=5 // pred_check_branch
      %405 = sbr.rel (%p403) target = $region64
    $region63: #{vit_forward.5} parent=5 // pred_region
      // Predicated region
      $region65: #{vit_forward.5} parent=63 // pred_check
        %p406 = pneg %p41
      $region66: #{vit_forward.5} parent=63 // pred_check_branch
        %408 = sbr.rel (%p406) target = $region68
      $region67: #{vit_forward.5} parent=63 // pred_region
        %p409 = scmp.lt.s32.totalorder %s21, 1
        %s410 = scalar_select %p409, %s21, 1
        %s411 = smul.addr %s410, 8
        %s412 = scalar_lea.vmem %s0, %s411
      $region68: #{vit_forward.5} parent=63 // pred_fallthru
        _
    $region64: #{vit_forward.5} parent=5 // pred_fallthru
      _
    %p413 = scmp.le.s32.totalorder 1, %s21
    %p414 = scmp.lt.s32.totalorder %s21, 3
    %p415 = pnand %p413, %p414
    %p416 = pneg %p415
    // Predicated region
    $region69: #{vit_forward.5} parent=5 // pred_check
      _
    $region70: #{vit_forward.5} parent=5 // pred_check_branch
      %418 = sbr.rel (%p415) target = $region72
    $region71: #{vit_forward.5} parent=5 // pred_region
      %s419 = ssub.s32 %s21, 1
      %p420 = scmp.lt.s32.totalorder %s26, 1
      %s421 = scalar_select %p420, %s26, 1
      %s422 = smul.addr %s421, 8
      %s423 = scalar_lea.vmem %s0, %s422
      %p424 = pneg %p47
      %p425 = pneg %p44
      %p426 = pneg %p68
      %p427 = pneg %p65
      %p428 = pneg %p89
      %p429 = pneg %p86
      %p430 = pneg %p110
      %p431 = pneg %p107
      %p432 = pneg %p131
      %p433 = pneg %p128
      %p434 = pneg %p152
      %p435 = pneg %p149
      %p436 = pneg %p173
      %p437 = pneg %p170
      %p438 = pneg %p194
      %p439 = pneg %p191
      %p440 = pneg %p215
      %p441 = pneg %p212
      %p442 = pneg %p236
      %p443 = pneg %p233
      %p444 = pneg %p257
      %p445 = pneg %p254
      %p446 = pneg %p278
      %p447 = pneg %p275
      %p448 = pneg %p299
      %p449 = pneg %p296
      %p450 = pneg %p325
      %p451 = pneg %p322
      %p452 = scmp.lt.s32.totalorder %s26, 1
      %s453 = scalar_select %p452, %s26, 1
      %s454 = smul.addr %s453, 8
      %s455 = scalar_lea.vmem %s13, %s454
      %p456 = pneg %p351
      %p457 = pneg %p348
      %p458 = scmp.lt.s32.totalorder %s26, 1
      %s459 = scalar_select %p458, %s26, 1
      %s460 = smul.addr %s459, 8
      %s461 = scalar_lea.vmem %s14, %s460
      %p462 = scmp.lt.s32.totalorder %s26, 1
      %s463 = scalar_select %p462, %s26, 1
      %s464 = smul.addr %s463, 8
      %s465 = scalar_lea.vmem %s0, %s464
      %p466 = scmp.lt.s32.totalorder %s26, 1
      %s467 = scalar_select %p466, %s26, 1
      %s468 = smul.addr %s467, 8
      %s469 = scalar_lea.vmem %s13, %s468
      %p470 = scmp.lt.s32.totalorder %s26, 1
      %s471 = scalar_select %p470, %s26, 1
      %s472 = smul.addr %s471, 8
      %s473 = scalar_lea.vmem %s14, %s472
      %v475 = vld [vmem:[%s465] sm:$0x1f]
      %v476 = vld [vmem:[%s1] sm:$0x1]
      %v477 = vld [vmem:[%s2] sm:$0x1]
      %vm478 = vcmask 258048
      %v479 = vsel %vm478, %v475, 0.0
      %480 = vadd.xlane.f32.xlu0 %v479
      %v481 = vpop.xlane.xlu0 %480
      %v482 = vrcp.pop 32.0
      %v483 = vmul.f32 %v481, %v482
      %v484 = vsub.f32 %v475, %v483
      %v485 = vmul.f32 %v484, %v484
      %v486 = vsel %vm478, %v485, 0.0
      %487 = vadd.xlane.f32.xlu0 %v486
      %v488 = vpop.xlane.xlu0 %487
      %v489 = vmul.f32 %v488, %v482
      %v490 = vadd.f32 %v489, 1e-05
      %v491 = vrsqrt.pop %v490
      %v492 = vmul.f32 %v484, %v491
      %v494 = vlaneseq
      %v495 = vshrl.u32 %v494, 7
      %v496 = vsub.s32 0, %v495
      %v497 = vrot.slane %v476, %v496
      %v499 = vmul.f32 %v492, %v497
      %v501 = vlaneseq
      %v502 = vshrl.u32 %v501, 7
      %v503 = vsub.s32 0, %v502
      %v504 = vrot.slane %v477, %v503
      %v506 = vadd.f32 %v499, %v504
      %v507 = vpack.c.bf16 %v506, %v506
      %v508 = vld [vmem:[%s3] sm:$0xf]
      %v509 = vld [vmem:[%s3 + $0x4] sm:$0xf]
      %v510 = vld [vmem:[%s3 + $0x8] sm:$0xf]
      %v511 = vld [vmem:[%s3 + $0xc] sm:$0xf]
      %v512 = vld [vmem:[%s4] sm:$0x1]
      %v514 = vlaneseq
      %v515 = vshrl.u32 %v514, 7
      %v516 = vsub.s32 0, %v515
      %v517 = vrot.slane %v512, %v516
      %v523 = vunpack.c.l.b16 %v508
      %v524 = vunpack.c.l.b16 %v509
      %v525 = vunpack.c.l.b16 %v510
      %v526 = vunpack.c.l.b16 %v511
      %v527 = vpack.c.b16 %v524, %v523
      %v528 = vpack.c.b16 %v526, %v525
      %vm531 = vcmask 261120
      %v533 = vsel %vm531, %v507, 0
      %535 = vmatprep.subr.bf16.mxu0 0
      %536 = vmatpush1.bf16.msra.mxu0 %v527
      %537 = vmatprep.subr.bf16.mxu0 0
      %538 = vmatpush1.bf16.msra.mxu0 %v528
      %539 = vmatprep.subr.bf16.mxu0 0
      %540 = vmatpush1.bf16.msra.mxu0 0
      %541 = vmatprep.subr.bf16.mxu0 0
      %542 = vmatpush1.bf16.msra.mxu0 0
      %543 = vmatprep.subr.bf16.mxu0 0
      %544 = vmatpush1.bf16.msra.mxu0 0
      %545 = vmatprep.subr.bf16.mxu0 0
      %546 = vmatpush1.bf16.msra.mxu0 0
      %547 = vmatprep.subr.bf16.mxu0 0
      %548 = vmatpush1.bf16.msra.mxu0 0
      %549 = vmatprep.subr.bf16.mxu0 0
      %550 = vmatpush1.bf16.msra.mxu0 0
      %551 = vmatprep.subr.bf16.mxu0 0
      %552 = vmatpush1.bf16.msra.mxu0 0
      %553 = vmatprep.subr.bf16.mxu0 0
      %554 = vmatpush1.bf16.msra.mxu0 0
      %555 = vmatprep.subr.bf16.mxu0 0
      %556 = vmatpush1.bf16.msra.mxu0 0
      %557 = vmatprep.subr.bf16.mxu0 0
      %558 = vmatpush1.bf16.msra.mxu0 0
      %559 = vmatprep.subr.bf16.mxu0 0
      %560 = vmatpush1.bf16.msra.mxu0 0
      %561 = vmatprep.subr.bf16.mxu0 0
      %562 = vmatpush1.bf16.msra.mxu0 0
      %563 = vmatprep.subr.bf16.mxu0 0
      %564 = vmatpush1.bf16.msra.mxu0 0
      %565 = vmatprep.subr.bf16.mxu0 0
      %566 = vmatpush1.bf16.msra.mxu0 0
      %567 = vmatprep.mubr.bf16.mxu0 0
      %568 = vmatmul.mubr.bf16.gmra.mrb[0].mxu0 %v533
      %v569 = vpop.f32.mrb[0].mxu0
      %v570 = vadd.f32 %v517, %v569
      %v571 = vpop.f32.mrb[0].mxu0
      %v572 = vpop.f32.mrb[0].mxu0
      %v573 = vpop.f32.mrb[0].mxu0
      %574 = vdwg.mxu0
      %v575 = vld [vmem:[%s5] sm:$0xf]
      %v576 = vld [vmem:[%s5 + $0x4] sm:$0xf]
      %v577 = vld [vmem:[%s5 + $0x8] sm:$0xf]
      %v578 = vld [vmem:[%s5 + $0xc] sm:$0xf]
      %v579 = vpack.c.bf16 %v570, %v570
      %581 = vrot.lane.b32.xlu0 %v579, 96
      %v582 = vpop.permute.xlu0 %581
      %vm583 = vcmask 64512
      %v585 = vsel %vm583, %v579, 0
      %v588 = vsel %vm583, %v582, 0
      %590 = vmatprep.subr.bf16.mxu0 0
      %591 = vmatpush1.bf16.xpose.msra.mxu0 %v588
      %592 = vmatprep.subr.bf16.mxu0 0
      %593 = vmatpush1.bf16.xpose.msra.mxu0 0
      %594 = vmatprep.subr.bf16.mxu0 0
      %595 = vmatpush1.bf16.xpose.msra.mxu0 0
      %596 = vmatprep.subr.bf16.mxu0 0
      %597 = vmatpush1.bf16.xpose.msra.mxu0 0
      %598 = vmatprep.subr.bf16.mxu0 0
      %599 = vmatpush1.bf16.xpose.msra.mxu0 0
      %600 = vmatprep.subr.bf16.mxu0 0
      %601 = vmatpush1.bf16.xpose.msra.mxu0 0
      %602 = vmatprep.subr.bf16.mxu0 0
      %603 = vmatpush1.bf16.xpose.msra.mxu0 0
      %604 = vmatprep.subr.bf16.mxu0 0
      %605 = vmatpush1.bf16.xpose.msra.mxu0 0
      %606 = vmatprep.subr.bf16.mxu0 0
      %607 = vmatpush1.bf16.xpose.msra.mxu0 0
      %608 = vmatprep.subr.bf16.mxu0 0
      %609 = vmatpush1.bf16.xpose.msra.mxu0 0
      %610 = vmatprep.subr.bf16.mxu0 0
      %611 = vmatpush1.bf16.xpose.msra.mxu0 0
      %612 = vmatprep.subr.bf16.mxu0 0
      %613 = vmatpush1.bf16.xpose.msra.mxu0 0
      %614 = vmatprep.subr.bf16.mxu0 0
      %615 = vmatpush1.bf16.xpose.msra.mxu0 0
      %616 = vmatprep.subr.bf16.mxu0 0
      %617 = vmatpush1.bf16.xpose.msra.mxu0 0
      %618 = vmatprep.subr.bf16.mxu0 0
      %619 = vmatpush1.bf16.xpose.msra.mxu0 0
      %620 = vmatprep.subr.bf16.mxu0 0
      %621 = vmatpush1.bf16.xpose.msra.mxu0 0
      %622 = vmatprep.mubr.bf16.mxu0 0
      %623 = vmatmul.mubr.bf16.gmra.mrb[0].mxu0 %v585
      %v624 = vpop.f32.mrb[0].mxu0
      %v625 = vadd.f32 0.0, %v624
      %v626 = vpop.f32.mrb[0].mxu0
      %v627 = vpop.f32.mrb[0].mxu0
      %v628 = vpop.f32.mrb[0].mxu0
      %629 = vdwg.mxu0
      %v630 = vmul.f32 %v625, 0.35355338
      %vm631 = vcmask 36864
      %v632 = vsel %vm631, %v630, -inf
      %633 = vmax.xlane.f32.xlu0 %v632
      %v634 = vpop.xlane.xlu0 %633
      %v635 = vsub.f32 %v630, %v634
      %v636 = vmul.f32 %v635, 1.442695
      %v637 = vpow.pop %v636
      %v638 = vsel %vm631, %v637, 0.0
      %639 = vadd.xlane.f32.xlu0 %v638
      %v640 = vpop.xlane.xlu0 %639
      %v641 = vrcp.pop %v640
      %v642 = vmul.f32 %v637, %v641
      %v643 = vadd.f32 %v642, 0.0
      %v644 = vpack.c.bf16 %v642, %v642
      %645 = vrot.lane.b32.xlu0 %v579, 64
      %v646 = vpop.permute.xlu0 %645
      %vm647 = vcmask 39936
      %v649 = vsel %vm647, %v644, 0
      %vm651 = vcmask 1041408
      %vm652 = vcmask 1042432
      %v653 = vsel %vm651, 4294967295, 65535
      %v654 = vsel %vm652, %v653, 0
      %v656 = vand.u32 %v646, %v654
      %658 = vmatprep.subr.bf16.mxu0 0
      %659 = vmatpush1.bf16.msra.mxu0 %v656
      %660 = vmatprep.subr.bf16.mxu0 0
      %661 = vmatpush1.bf16.msra.mxu0 0
      %662 = vmatprep.subr.bf16.mxu0 0
      %663 = vmatpush1.bf16.msra.mxu0 0
      %664 = vmatprep.subr.bf16.mxu0 0
      %665 = vmatpush1.bf16.msra.mxu0 0
      %666 = vmatprep.subr.bf16.mxu0 0
      %667 = vmatpush1.bf16.msra.mxu0 0
      %668 = vmatprep.subr.bf16.mxu0 0
      %669 = vmatpush1.bf16.msra.mxu0 0
      %670 = vmatprep.subr.bf16.mxu0 0
      %671 = vmatpush1.bf16.msra.mxu0 0
      %672 = vmatprep.subr.bf16.mxu0 0
      %673 = vmatpush1.bf16.msra.mxu0 0
      %674 = vmatprep.subr.bf16.mxu0 0
      %675 = vmatpush1.bf16.msra.mxu0 0
      %676 = vmatprep.subr.bf16.mxu0 0
      %677 = vmatpush1.bf16.msra.mxu0 0
      %678 = vmatprep.subr.bf16.mxu0 0
      %679 = vmatpush1.bf16.msra.mxu0 0
      %680 = vmatprep.subr.bf16.mxu0 0
      %681 = vmatpush1.bf16.msra.mxu0 0
      %682 = vmatprep.subr.bf16.mxu0 0
      %683 = vmatpush1.bf16.msra.mxu0 0
      %684 = vmatprep.subr.bf16.mxu0 0
      %685 = vmatpush1.bf16.msra.mxu0 0
      %686 = vmatprep.subr.bf16.mxu0 0
      %687 = vmatpush1.bf16.msra.mxu0 0
      %688 = vmatprep.subr.bf16.mxu0 0
      %689 = vmatpush1.bf16.msra.mxu0 0
      %690 = vmatprep.mubr.bf16.mxu0 0
      %691 = vmatmul.mubr.bf16.gmra.mrb[0].mxu0 %v649
      %v692 = vpop.f32.mrb[0].mxu0
      %v693 = vadd.f32 0.0, %v692
      %v694 = vpop.f32.mrb[0].mxu0
      %v695 = vpop.f32.mrb[0].mxu0
      %v696 = vpop.f32.mrb[0].mxu0
      %697 = vdwg.mxu0
      %v698 = vpack.c.bf16 %v693, %v693
      %699 = vrot.lane.b32.xlu0 %v579, 120
      %v700 = vpop.permute.xlu0 %699
      %701 = vrot.lane.b32.xlu0 %v579, 88
      %v702 = vpop.permute.xlu0 %701
      %v704 = vsel %vm583, %v700, 0
      %v707 = vsel %vm583, %v702, 0
      %709 = vmatprep.subr.bf16.mxu0 0
      %710 = vmatpush1.bf16.xpose.msra.mxu0 %v707
      %711 = vmatprep.subr.bf16.mxu0 0
      %712 = vmatpush1.bf16.xpose.msra.mxu0 0
      %713 = vmatprep.subr.bf16.mxu0 0
      %714 = vmatpush1.bf16.xpose.msra.mxu0 0
      %715 = vmatprep.subr.bf16.mxu0 0
      %716 = vmatpush1.bf16.xpose.msra.mxu0 0
      %717 = vmatprep.subr.bf16.mxu0 0
      %718 = vmatpush1.bf16.xpose.msra.mxu0 0
      %719 = vmatprep.subr.bf16.mxu0 0
      %720 = vmatpush1.bf16.xpose.msra.mxu0 0
      %721 = vmatprep.subr.bf16.mxu0 0
      %722 = vmatpush1.bf16.xpose.msra.mxu0 0
      %723 = vmatprep.subr.bf16.mxu0 0
      %724 = vmatpush1.bf16.xpose.msra.mxu0 0
      %725 = vmatprep.subr.bf16.mxu0 0
      %726 = vmatpush1.bf16.xpose.msra.mxu0 0
      %727 = vmatprep.subr.bf16.mxu0 0
      %728 = vmatpush1.bf16.xpose.msra.mxu0 0
      %729 = vmatprep.subr.bf16.mxu0 0
      %730 = vmatpush1.bf16.xpose.msra.mxu0 0
      %731 = vmatprep.subr.bf16.mxu0 0
      %732 = vmatpush1.bf16.xpose.msra.mxu0 0
      %733 = vmatprep.subr.bf16.mxu0 0
      %734 = vmatpush1.bf16.xpose.msra.mxu0 0
      %735 = vmatprep.subr.bf16.mxu0 0
      %736 = vmatpush1.bf16.xpose.msra.mxu0 0
      %737 = vmatprep.subr.bf16.mxu0 0
      %738 = vmatpush1.bf16.xpose.msra.mxu0 0
      %739 = vmatprep.subr.bf16.mxu0 0
      %740 = vmatpush1.bf16.xpose.msra.mxu0 0
      %741 = vmatprep.mubr.bf16.mxu0 0
      %742 = vmatmul.mubr.bf16.gmra.mrb[0].mxu0 %v704
      %v743 = vpop.f32.mrb[0].mxu0
      %v744 = vadd.f32 0.0, %v743
      %v745 = vpop.f32.mrb[0].mxu0
      %v746 = vpop.f32.mrb[0].mxu0
      %v747 = vpop.f32.mrb[0].mxu0
      %748 = vdwg.mxu0
      %v749 = vmul.f32 %v744, 0.35355338
      %v750 = vsel %vm631, %v749, -inf
      %751 = vmax.xlane.f32.xlu0 %v750
      %v752 = vpop.xlane.xlu0 %751
      %v753 = vsub.f32 %v749, %v752
      %v754 = vmul.f32 %v753, 1.442695
      %v755 = vpow.pop %v754
      %v756 = vsel %vm631, %v755, 0.0
      %757 = vadd.xlane.f32.xlu0 %v756
      %v758 = vpop.xlane.xlu0 %757
      %v759 = vrcp.pop %v758
      %v760 = vmul.f32 %v755, %v759
      %v761 = vadd.f32 %v643, %v760
      %v762 = vpack.c.bf16 %v760, %v760
      %763 = vrot.lane.b32.xlu0 %v579, 56
      %v764 = vpop.permute.xlu0 %763
      %v766 = vsel %vm647, %v762, 0
      %v769 = vand.u32 %v764, %v654
      %771 = vmatprep.subr.bf16.mxu0 0
      %772 = vmatpush1.bf16.msra.mxu0 %v769
      %773 = vmatprep.subr.bf16.mxu0 0
      %774 = vmatpush1.bf16.msra.mxu0 0
      %775 = vmatprep.subr.bf16.mxu0 0
      %776 = vmatpush1.bf16.msra.mxu0 0
      %777 = vmatprep.subr.bf16.mxu0 0
      %778 = vmatpush1.bf16.msra.mxu0 0
      %779 = vmatprep.subr.bf16.mxu0 0
      %780 = vmatpush1.bf16.msra.mxu0 0
      %781 = vmatprep.subr.bf16.mxu0 0
      %782 = vmatpush1.bf16.msra.mxu0 0
      %783 = vmatprep.subr.bf16.mxu0 0
      %784 = vmatpush1.bf16.msra.mxu0 0
      %785 = vmatprep.subr.bf16.mxu0 0
      %786 = vmatpush1.bf16.msra.mxu0 0
      %787 = vmatprep.subr.bf16.mxu0 0
      %788 = vmatpush1.bf16.msra.mxu0 0
      %789 = vmatprep.subr.bf16.mxu0 0
      %790 = vmatpush1.bf16.msra.mxu0 0
      %791 = vmatprep.subr.bf16.mxu0 0
      %792 = vmatpush1.bf16.msra.mxu0 0
      %793 = vmatprep.subr.bf16.mxu0 0
      %794 = vmatpush1.bf16.msra.mxu0 0
      %795 = vmatprep.subr.bf16.mxu0 0
      %796 = vmatpush1.bf16.msra.mxu0 0
      %797 = vmatprep.subr.bf16.mxu0 0
      %798 = vmatpush1.bf16.msra.mxu0 0
      %799 = vmatprep.subr.bf16.mxu0 0
      %800 = vmatpush1.bf16.msra.mxu0 0
      %801 = vmatprep.subr.bf16.mxu0 0
      %802 = vmatpush1.bf16.msra.mxu0 0
      %803 = vmatprep.mubr.bf16.mxu0 0
      %804 = vmatmul.mubr.bf16.gmra.mrb[0].mxu0 %v766
      %v805 = vpop.f32.mrb[0].mxu0
      %v806 = vadd.f32 0.0, %v805
      %v807 = vpop.f32.mrb[0].mxu0
      %v808 = vpop.f32.mrb[0].mxu0
      %v809 = vpop.f32.mrb[0].mxu0
      %810 = vdwg.mxu0
      %v811 = vpack.c.bf16 %v806, %v806
      %v813 = vsel %vm583, %v811, 0
      %vm815 = vcmask 1043456
      %v817 = vsel %vm815, %v576, 0
      %819 = vmatprep.subr.bf16.mxu0 0
      %820 = vmatpush1.bf16.msra.mxu0 %v817
      %821 = vmatprep.subr.bf16.mxu0 0
      %822 = vmatpush1.bf16.msra.mxu0 0
      %823 = vmatprep.subr.bf16.mxu0 0
      %824 = vmatpush1.bf16.msra.mxu0 0
      %825 = vmatprep.subr.bf16.mxu0 0
      %826 = vmatpush1.bf16.msra.mxu0 0
      %827 = vmatprep.subr.bf16.mxu0 0
      %828 = vmatpush1.bf16.msra.mxu0 0
      %829 = vmatprep.subr.bf16.mxu0 0
      %830 = vmatpush1.bf16.msra.mxu0 0
      %831 = vmatprep.subr.bf16.mxu0 0
      %832 = vmatpush1.bf16.msra.mxu0 0
      %833 = vmatprep.subr.bf16.mxu0 0
      %834 = vmatpush1.bf16.msra.mxu0 0
      %835 = vmatprep.subr.bf16.mxu0 0
      %836 = vmatpush1.bf16.msra.mxu0 0
      %837 = vmatprep.subr.bf16.mxu0 0
      %838 = vmatpush1.bf16.msra.mxu0 0
      %839 = vmatprep.subr.bf16.mxu0 0
      %840 = vmatpush1.bf16.msra.mxu0 0
      %841 = vmatprep.subr.bf16.mxu0 0
      %842 = vmatpush1.bf16.msra.mxu0 0
      %843 = vmatprep.subr.bf16.mxu0 0
      %844 = vmatpush1.bf16.msra.mxu0 0
      %845 = vmatprep.subr.bf16.mxu0 0
      %846 = vmatpush1.bf16.msra.mxu0 0
      %847 = vmatprep.subr.bf16.mxu0 0
      %848 = vmatpush1.bf16.msra.mxu0 0
      %849 = vmatprep.subr.bf16.mxu0 0
      %850 = vmatpush1.bf16.msra.mxu0 0
      %851 = vmatprep.mubr.bf16.mxu0 0
      %852 = vmatmul.mubr.bf16.gmra.mrb[0].mxu0 %v813
      %v853 = vpop.f32.mrb[0].mxu0
      %v854 = vadd.f32 0.0, %v853
      %v855 = vpop.f32.mrb[0].mxu0
      %v856 = vpop.f32.mrb[0].mxu0
      %v857 = vpop.f32.mrb[0].mxu0
      %858 = vdwg.mxu0
      %v860 = vsel %vm583, %v698, 0
      %v863 = vsel %vm815, %v575, 0
      %865 = vmatprep.subr.bf16.mxu0 0
      %866 = vmatpush1.bf16.msra.mxu0 %v863
      %867 = vmatprep.subr.bf16.mxu0 0
      %868 = vmatpush1.bf16.msra.mxu0 0
      %869 = vmatprep.subr.bf16.mxu0 0
      %870 = vmatpush1.bf16.msra.mxu0 0
      %871 = vmatprep.subr.bf16.mxu0 0
      %872 = vmatpush1.bf16.msra.mxu0 0
      %873 = vmatprep.subr.bf16.mxu0 0
      %874 = vmatpush1.bf16.msra.mxu0 0
      %875 = vmatprep.subr.bf16.mxu0 0
      %876 = vmatpush1.bf16.msra.mxu0 0
      %877 = vmatprep.subr.bf16.mxu0 0
      %878 = vmatpush1.bf16.msra.mxu0 0
      %879 = vmatprep.subr.bf16.mxu0 0
      %880 = vmatpush1.bf16.msra.mxu0 0
      %881 = vmatprep.subr.bf16.mxu0 0
      %882 = vmatpush1.bf16.msra.mxu0 0
      %883 = vmatprep.subr.bf16.mxu0 0
      %884 = vmatpush1.bf16.msra.mxu0 0
      %885 = vmatprep.subr.bf16.mxu0 0
      %886 = vmatpush1.bf16.msra.mxu0 0
      %887 = vmatprep.subr.bf16.mxu0 0
      %888 = vmatpush1.bf16.msra.mxu0 0
      %889 = vmatprep.subr.bf16.mxu0 0
      %890 = vmatpush1.bf16.msra.mxu0 0
      %891 = vmatprep.subr.bf16.mxu0 0
      %892 = vmatpush1.bf16.msra.mxu0 0
      %893 = vmatprep.subr.bf16.mxu0 0
      %894 = vmatpush1.bf16.msra.mxu0 0
      %895 = vmatprep.subr.bf16.mxu0 0
      %896 = vmatpush1.bf16.msra.mxu0 0
      %897 = vmatprep.mubr.bf16.mxu0 0
      %898 = vmatmul.mubr.bf16.gmra.mrb[0].mxu0 %v860
      %v899 = vpop.f32.mrb[0].mxu0
      %v900 = vadd.f32 %v854, %v899
      %v901 = vpop.f32.mrb[0].mxu0
      %v902 = vpop.f32.mrb[0].mxu0
      %v903 = vpop.f32.mrb[0].mxu0
      %904 = vdwg.mxu0
      %905 = vrot.lane.b32.xlu0 %v579, 112
      %v906 = vpop.permute.xlu0 %905
      %907 = vrot.lane.b32.xlu0 %v579, 80
      %v908 = vpop.permute.xlu0 %907
      %v910 = vsel %vm583, %v906, 0
      %v913 = vsel %vm583, %v908, 0
      %915 = vmatprep.subr.bf16.mxu0 0
      %916 = vmatpush1.bf16.xpose.msra.mxu0 %v913
      %917 = vmatprep.subr.bf16.mxu0 0
      %918 = vmatpush1.bf16.xpose.msra.mxu0 0
      %919 = vmatprep.subr.bf16.mxu0 0
      %920 = vmatpush1.bf16.xpose.msra.mxu0 0
      %921 = vmatprep.subr.bf16.mxu0 0
      %922 = vmatpush1.bf16.xpose.msra.mxu0 0
      %923 = vmatprep.subr.bf16.mxu0 0
      %924 = vmatpush1.bf16.xpose.msra.mxu0 0
      %925 = vmatprep.subr.bf16.mxu0 0
      %926 = vmatpush1.bf16.xpose.msra.mxu0 0
      %927 = vmatprep.subr.bf16.mxu0 0
      %928 = vmatpush1.bf16.xpose.msra.mxu0 0
      %929 = vmatprep.subr.bf16.mxu0 0
      %930 = vmatpush1.bf16.xpose.msra.mxu0 0
      %931 = vmatprep.subr.bf16.mxu0 0
      %932 = vmatpush1.bf16.xpose.msra.mxu0 0
      %933 = vmatprep.subr.bf16.mxu0 0
      %934 = vmatpush1.bf16.xpose.msra.mxu0 0
      %935 = vmatprep.subr.bf16.mxu0 0
      %936 = vmatpush1.bf16.xpose.msra.mxu0 0
      %937 = vmatprep.subr.bf16.mxu0 0
      %938 = vmatpush1.bf16.xpose.msra.mxu0 0
      %939 = vmatprep.subr.bf16.mxu0 0
      %940 = vmatpush1.bf16.xpose.msra.mxu0 0
      %941 = vmatprep.subr.bf16.mxu0 0
      %942 = vmatpush1.bf16.xpose.msra.mxu0 0
      %943 = vmatprep.subr.bf16.mxu0 0
      %944 = vmatpush1.bf16.xpose.msra.mxu0 0
      %945 = vmatprep.subr.bf16.mxu0 0
      %946 = vmatpush1.bf16.xpose.msra.mxu0 0
      %947 = vmatprep.mubr.bf16.mxu0 0
      %948 = vmatmul.mubr.bf16.gmra.mrb[0].mxu0 %v910
      %v949 = vpop.f32.mrb[0].mxu0
      %v950 = vadd.f32 0.0, %v949
      %v951 = vpop.f32.mrb[0].mxu0
      %v952 = vpop.f32.mrb[0].mxu0
      %v953 = vpop.f32.mrb[0].mxu0
      %954 = vdwg.mxu0
      %v955 = vmul.f32 %v950, 0.35355338
      %v956 = vsel %vm631, %v955, -inf
      %957 = vmax.xlane.f32.xlu0 %v956
      %v958 = vpop.xlane.xlu0 %957
      %v959 = vsub.f32 %v955, %v958
      %v960 = vmul.f32 %v959, 1.442695
      %v961 = vpow.pop %v960
      %v962 = vsel %vm631, %v961, 0.0
      %963 = vadd.xlane.f32.xlu0 %v962
      %v964 = vpop.xlane.xlu0 %963
      %v965 = vrcp.pop %v964
      %v966 = vmul.f32 %v961, %v965
      %v967 = vadd.f32 %v761, %v966
      %v968 = vpack.c.bf16 %v966, %v966
      %969 = vrot.lane.b32.xlu0 %v579, 48
      %v970 = vpop.permute.xlu0 %969
      %v972 = vsel %vm647, %v968, 0
      %v975 = vand.u32 %v970, %v654
      %977 = vmatprep.subr.bf16.mxu0 0
      %978 = vmatpush1.bf16.msra.mxu0 %v975
      %979 = vmatprep.subr.bf16.mxu0 0
      %980 = vmatpush1.bf16.msra.mxu0 0
      %981 = vmatprep.subr.bf16.mxu0 0
      %982 = vmatpush1.bf16.msra.mxu0 0
      %983 = vmatprep.subr.bf16.mxu0 0
      %984 = vmatpush1.bf16.msra.mxu0 0
      %985 = vmatprep.subr.bf16.mxu0 0
      %986 = vmatpush1.bf16.msra.mxu0 0
      %987 = vmatprep.subr.bf16.mxu0 0
      %988 = vmatpush1.bf16.msra.mxu0 0
      %989 = vmatprep.subr.bf16.mxu0 0
      %990 = vmatpush1.bf16.msra.mxu0 0
      %991 = vmatprep.subr.bf16.mxu0 0
      %992 = vmatpush1.bf16.msra.mxu0 0
      %993 = vmatprep.subr.bf16.mxu0 0
      %994 = vmatpush1.bf16.msra.mxu0 0
      %995 = vmatprep.subr.bf16.mxu0 0
      %996 = vmatpush1.bf16.msra.mxu0 0
      %997 = vmatprep.subr.bf16.mxu0 0
      %998 = vmatpush1.bf16.msra.mxu0 0
      %999 = vmatprep.subr.bf16.mxu0 0
      %1000 = vmatpush1.bf16.msra.mxu0 0
      %1001 = vmatprep.subr.bf16.mxu0 0
      %1002 = vmatpush1.bf16.msra.mxu0 0
      %1003 = vmatprep.subr.bf16.mxu0 0
      %1004 = vmatpush1.bf16.msra.mxu0 0
      %1005 = vmatprep.subr.bf16.mxu0 0
      %1006 = vmatpush1.bf16.msra.mxu0 0
      %1007 = vmatprep.subr.bf16.mxu0 0
      %1008 = vmatpush1.bf16.msra.mxu0 0
      %1009 = vmatprep.mubr.bf16.mxu0 0
      %1010 = vmatmul.mubr.bf16.gmra.mrb[0].mxu0 %v972
      %v1011 = vpop.f32.mrb[0].mxu0
      %v1012 = vadd.f32 0.0, %v1011
      %v1013 = vpop.f32.mrb[0].mxu0
      %v1014 = vpop.f32.mrb[0].mxu0
      %v1015 = vpop.f32.mrb[0].mxu0
      %1016 = vdwg.mxu0
      %v1017 = vpack.c.bf16 %v1012, %v1012
      %v1019 = vsel %vm583, %v1017, 0
      %v1022 = vsel %vm815, %v577, 0
      %1024 = vmatprep.subr.bf16.mxu0 0
      %1025 = vmatpush1.bf16.msra.mxu0 %v1022
      %1026 = vmatprep.subr.bf16.mxu0 0
      %1027 = vmatpush1.bf16.msra.mxu0 0
      %1028 = vmatprep.subr.bf16.mxu0 0
      %1029 = vmatpush1.bf16.msra.mxu0 0
      %1030 = vmatprep.subr.bf16.mxu0 0
      %1031 = vmatpush1.bf16.msra.mxu0 0
      %1032 = vmatprep.subr.bf16.mxu0 0
      %1033 = vmatpush1.bf16.msra.mxu0 0
      %1034 = vmatprep.subr.bf16.mxu0 0
      %1035 = vmatpush1.bf16.msra.mxu0 0
      %1036 = vmatprep.subr.bf16.mxu0 0
      %1037 = vmatpush1.bf16.msra.mxu0 0
      %1038 = vmatprep.subr.bf16.mxu0 0
      %1039 = vmatpush1.bf16.msra.mxu0 0
      %1040 = vmatprep.subr.bf16.mxu0 0
      %1041 = vmatpush1.bf16.msra.mxu0 0
      %1042 = vmatprep.subr.bf16.mxu0 0
      %1043 = vmatpush1.bf16.msra.mxu0 0
      %1044 = vmatprep.subr.bf16.mxu0 0
      %1045 = vmatpush1.bf16.msra.mxu0 0
      %1046 = vmatprep.subr.bf16.mxu0 0
      %1047 = vmatpush1.bf16.msra.mxu0 0
      %1048 = vmatprep.subr.bf16.mxu0 0
      %1049 = vmatpush1.bf16.msra.mxu0 0
      %1050 = vmatprep.subr.bf16.mxu0 0
      %1051 = vmatpush1.bf16.msra.mxu0 0
      %1052 = vmatprep.subr.bf16.mxu0 0
      %1053 = vmatpush1.bf16.msra.mxu0 0
      %1054 = vmatprep.subr.bf16.mxu0 0
      %1055 = vmatpush1.bf16.msra.mxu0 0
      %1056 = vmatprep.mubr.bf16.mxu0 0
      %1057 = vmatmul.mubr.bf16.gmra.mrb[0].mxu0 %v1019
      %v1058 = vpop.f32.mrb[0].mxu0
      %v1059 = vadd.f32 0.0, %v1058
      %v1060 = vpop.f32.mrb[0].mxu0
      %v1061 = vpop.f32.mrb[0].mxu0
      %v1062 = vpop.f32.mrb[0].mxu0
      %1063 = vdwg.mxu0
      %v1064 = vadd.f32 %v900, %v1059
      %1065 = vrot.lane.b32.xlu0 %v579, 104
      %v1066 = vpop.permute.xlu0 %1065
      %1067 = vrot.lane.b32.xlu0 %v579, 72
      %v1068 = vpop.permute.xlu0 %1067
      %v1070 = vsel %vm583, %v1066, 0
      %v1073 = vsel %vm583, %v1068, 0
      %1075 = vmatprep.subr.bf16.mxu0 0
      %1076 = vmatpush1.bf16.xpose.msra.mxu0 %v1073
      %1077 = vmatprep.subr.bf16.mxu0 0
      %1078 = vmatpush1.bf16.xpose.msra.mxu0 0
      %1079 = vmatprep.subr.bf16.mxu0 0
      %1080 = vmatpush1.bf16.xpose.msra.mxu0 0
      %1081 = vmatprep.subr.bf16.mxu0 0
      %1082 = vmatpush1.bf16.xpose.msra.mxu0 0
      %1083 = vmatprep.subr.bf16.mxu0 0
      %1084 = vmatpush1.bf16.xpose.msra.mxu0 0
      %1085 = vmatprep.subr.bf16.mxu0 0
      %1086 = vmatpush1.bf16.xpose.msra.mxu0 0
      %1087 = vmatprep.subr.bf16.mxu0 0
      %1088 = vmatpush1.bf16.xpose.msra.mxu0 0
      %1089 = vmatprep.subr.bf16.mxu0 0
      %1090 = vmatpush1.bf16.xpose.msra.mxu0 0
      %1091 = vmatprep.subr.bf16.mxu0 0
      %1092 = vmatpush1.bf16.xpose.msra.mxu0 0
      %1093 = vmatprep.subr.bf16.mxu0 0
      %1094 = vmatpush1.bf16.xpose.msra.mxu0 0
      %1095 = vmatprep.subr.bf16.mxu0 0
      %1096 = vmatpush1.bf16.xpose.msra.mxu0 0
      %1097 = vmatprep.subr.bf16.mxu0 0
      %1098 = vmatpush1.bf16.xpose.msra.mxu0 0
      %1099 = vmatprep.subr.bf16.mxu0 0
      %1100 = vmatpush1.bf16.xpose.msra.mxu0 0
      %1101 = vmatprep.subr.bf16.mxu0 0
      %1102 = vmatpush1.bf16.xpose.msra.mxu0 0
      %1103 = vmatprep.subr.bf16.mxu0 0
      %1104 = vmatpush1.bf16.xpose.msra.mxu0 0
      %1105 = vmatprep.subr.bf16.mxu0 0
      %1106 = vmatpush1.bf16.xpose.msra.mxu0 0
      %1107 = vmatprep.mubr.bf16.mxu0 0
      %1108 = vmatmul.mubr.bf16.gmra.mrb[0].mxu0 %v1070
      %v1109 = vpop.f32.mrb[0].mxu0
      %v1110 = vadd.f32 0.0, %v1109
      %v1111 = vpop.f32.mrb[0].mxu0
      %v1112 = vpop.f32.mrb[0].mxu0
      %v1113 = vpop.f32.mrb[0].mxu0
      %1114 = vdwg.mxu0
      %v1115 = vmul.f32 %v1110, 0.35355338
      %v1116 = vsel %vm631, %v1115, -inf
      %1117 = vmax.xlane.f32.xlu0 %v1116
      %v1118 = vpop.xlane.xlu0 %1117
      %v1119 = vsub.f32 %v1115, %v1118
      %v1120 = vmul.f32 %v1119, 1.442695
      %v1121 = vpow.pop %v1120
      %v1122 = vsel %vm631, %v1121, 0.0
      %1123 = vadd.xlane.f32.xlu0 %v1122
      %v1124 = vpop.xlane.xlu0 %1123
      %v1125 = vrcp.pop %v1124
      %v1126 = vmul.f32 %v1121, %v1125
      %v1127 = vadd.f32 %v967, %v1126
      %v1128 = vpack.c.bf16 %v1126, %v1126
      %1129 = vrot.lane.b32.xlu0 %v579, 40
      %v1130 = vpop.permute.xlu0 %1129
      %v1132 = vsel %vm647, %v1128, 0
      %v1135 = vand.u32 %v1130, %v654
      %1137 = vmatprep.subr.bf16.mxu0 0
      %1138 = vmatpush1.bf16.msra.mxu0 %v1135
      %1139 = vmatprep.subr.bf16.mxu0 0
      %1140 = vmatpush1.bf16.msra.mxu0 0
      %1141 = vmatprep.subr.bf16.mxu0 0
      %1142 = vmatpush1.bf16.msra.mxu0 0
      %1143 = vmatprep.subr.bf16.mxu0 0
      %1144 = vmatpush1.bf16.msra.mxu0 0
      %1145 = vmatprep.subr.bf16.mxu0 0
      %1146 = vmatpush1.bf16.msra.mxu0 0
      %1147 = vmatprep.subr.bf16.mxu0 0
      %1148 = vmatpush1.bf16.msra.mxu0 0
      %1149 = vmatprep.subr.bf16.mxu0 0
      %1150 = vmatpush1.bf16.msra.mxu0 0
      %1151 = vmatprep.subr.bf16.mxu0 0
      %1152 = vmatpush1.bf16.msra.mxu0 0
      %1153 = vmatprep.subr.bf16.mxu0 0
      %1154 = vmatpush1.bf16.msra.mxu0 0
      %1155 = vmatprep.subr.bf16.mxu0 0
      %1156 = vmatpush1.bf16.msra.mxu0 0
      %1157 = vmatprep.subr.bf16.mxu0 0
      %1158 = vmatpush1.bf16.msra.mxu0 0
      %1159 = vmatprep.subr.bf16.mxu0 0
      %1160 = vmatpush1.bf16.msra.mxu0 0
      %1161 = vmatprep.subr.bf16.mxu0 0
      %1162 = vmatpush1.bf16.msra.mxu0 0
      %1163 = vmatprep.subr.bf16.mxu0 0
      %1164 = vmatpush1.bf16.msra.mxu0 0
      %1165 = vmatprep.subr.bf16.mxu0 0
      %1166 = vmatpush1.bf16.msra.mxu0 0
      %1167 = vmatprep.subr.bf16.mxu0 0
      %1168 = vmatpush1.bf16.msra.mxu0 0
      %1169 = vmatprep.mubr.bf16.mxu0 0
      %1170 = vmatmul.mubr.bf16.gmra.mrb[0].mxu0 %v1132
      %v1171 = vpop.f32.mrb[0].mxu0
      %v1172 = vadd.f32 0.0, %v1171
      %v1173 = vpop.f32.mrb[0].mxu0
      %v1174 = vpop.f32.mrb[0].mxu0
      %v1175 = vpop.f32.mrb[0].mxu0
      %1176 = vdwg.mxu0
      %v1177 = vpack.c.bf16 %v1172, %v1172
      %v1179 = vsel %vm583, %v1177, 0
      %v1182 = vsel %vm815, %v578, 0
      %1184 = vmatprep.subr.bf16.mxu0 0
      %1185 = vmatpush1.bf16.msra.mxu0 %v1182
      %1186 = vmatprep.subr.bf16.mxu0 0
      %1187 = vmatpush1.bf16.msra.mxu0 0
      %1188 = vmatprep.subr.bf16.mxu0 0
      %1189 = vmatpush1.bf16.msra.mxu0 0
      %1190 = vmatprep.subr.bf16.mxu0 0
      %1191 = vmatpush1.bf16.msra.mxu0 0
      %1192 = vmatprep.subr.bf16.mxu0 0
      %1193 = vmatpush1.bf16.msra.mxu0 0
      %1194 = vmatprep.subr.bf16.mxu0 0
      %1195 = vmatpush1.bf16.msra.mxu0 0
      %1196 = vmatprep.subr.bf16.mxu0 0
      %1197 = vmatpush1.bf16.msra.mxu0 0
      %1198 = vmatprep.subr.bf16.mxu0 0
      %1199 = vmatpush1.bf16.msra.mxu0 0
      %1200 = vmatprep.subr.bf16.mxu0 0
      %1201 = vmatpush1.bf16.msra.mxu0 0
      %1202 = vmatprep.subr.bf16.mxu0 0
      %1203 = vmatpush1.bf16.msra.mxu0 0
      %1204 = vmatprep.subr.bf16.mxu0 0
      %1205 = vmatpush1.bf16.msra.mxu0 0
      %1206 = vmatprep.subr.bf16.mxu0 0
      %1207 = vmatpush1.bf16.msra.mxu0 0
      %1208 = vmatprep.subr.bf16.mxu0 0
      %1209 = vmatpush1.bf16.msra.mxu0 0
      %1210 = vmatprep.subr.bf16.mxu0 0
      %1211 = vmatpush1.bf16.msra.mxu0 0
      %1212 = vmatprep.subr.bf16.mxu0 0
      %1213 = vmatpush1.bf16.msra.mxu0 0
      %1214 = vmatprep.subr.bf16.mxu0 0
      %1215 = vmatpush1.bf16.msra.mxu0 0
      %1216 = vmatprep.mubr.bf16.mxu0 0
      %1217 = vmatmul.mubr.bf16.gmra.mrb[0].mxu0 %v1179
      %v1218 = vpop.f32.mrb[0].mxu0
      %v1219 = vadd.f32 0.0, %v1218
      %v1220 = vpop.f32.mrb[0].mxu0
      %v1221 = vpop.f32.mrb[0].mxu0
      %v1222 = vpop.f32.mrb[0].mxu0
      %1223 = vdwg.mxu0
      %v1224 = vadd.f32 %v1064, %v1219
      %v1225 = vmul.f32 %v1127, 0.25
      %1226 = vst.msk [vmem:[%s473] sm:$0x1f] %vm631, %v1225
      %v1227 = vadd.f32 %v475, %v1224
      %v1228 = vld [vmem:[%s6] sm:$0x1]
      %v1230 = vlaneseq
      %v1231 = vshrl.u32 %v1230, 7
      %v1232 = vsub.s32 0, %v1231
      %v1233 = vrot.slane %v1228, %v1232
      %v1235 = vadd.f32 %v1227, %v1233
      %v1236 = vld [vmem:[%s7] sm:$0x1]
      %v1237 = vld [vmem:[%s8] sm:$0x1]
      %v1238 = vsel %vm478, %v1235, 0.0
      %1239 = vadd.xlane.f32.xlu0 %v1238
      %v1240 = vpop.xlane.xlu0 %1239
      %v1241 = vmul.f32 %v1240, %v482
      %v1242 = vsub.f32 %v1235, %v1241
      %v1243 = vmul.f32 %v1242, %v1242
      %v1244 = vsel %vm478, %v1243, 0.0
      %1245 = vadd.xlane.f32.xlu0 %v1244
      %v1246 = vpop.xlane.xlu0 %1245
      %v1247 = vmul.f32 %v1246, %v482
      %v1248 = vadd.f32 %v1247, 1e-05
      %v1249 = vrsqrt.pop %v1248
      %v1250 = vmul.f32 %v1242, %v1249
      %v1252 = vlaneseq
      %v1253 = vshrl.u32 %v1252, 7
      %v1254 = vsub.s32 0, %v1253
      %v1255 = vrot.slane %v1236, %v1254
      %v1257 = vmul.f32 %v1250, %v1255
      %v1259 = vlaneseq
      %v1260 = vshrl.u32 %v1259, 7
      %v1261 = vsub.s32 0, %v1260
      %v1262 = vrot.slane %v1237, %v1261
      %v1264 = vadd.f32 %v1257, %v1262
      %v1265 = vpack.c.bf16 %v1264, %v1264
      %v1266 = vld [vmem:[%s9] sm:$0xf]
      %v1267 = vld [vmem:[%s9 + $0x4] sm:$0xf]
      %v1268 = vld [vmem:[%s9 + $0x8] sm:$0xf]
      %v1269 = vld [vmem:[%s9 + $0xc] sm:$0xf]
      %v1270 = vld [vmem:[%s10] sm:$0x1]
      %v1272 = vlaneseq
      %v1273 = vshrl.u32 %v1272, 7
      %v1274 = vsub.s32 0, %v1273
      %v1275 = vrot.slane %v1270, %v1274
      %v1281 = vunpack.c.l.b16 %v1266
      %v1282 = vunpack.c.l.b16 %v1267
      %v1283 = vunpack.c.l.b16 %v1268
      %v1284 = vunpack.c.l.b16 %v1269
      %v1285 = vpack.c.b16 %v1282, %v1281
      %v1286 = vpack.c.b16 %v1284, %v1283
      %v1290 = vsel %vm531, %v1265, 0
      %1292 = vmatprep.subr.bf16.mxu0 0
      %1293 = vmatpush1.bf16.msra.mxu0 %v1285
      %1294 = vmatprep.subr.bf16.mxu0 0
      %1295 = vmatpush1.bf16.msra.mxu0 %v1286
      %1296 = vmatprep.subr.bf16.mxu0 0
      %1297 = vmatpush1.bf16.msra.mxu0 0
      %1298 = vmatprep.subr.bf16.mxu0 0
      %1299 = vmatpush1.bf16.msra.mxu0 0
      %1300 = vmatprep.subr.bf16.mxu0 0
      %1301 = vmatpush1.bf16.msra.mxu0 0
      %1302 = vmatprep.subr.bf16.mxu0 0
      %1303 = vmatpush1.bf16.msra.mxu0 0
      %1304 = vmatprep.subr.bf16.mxu0 0
      %1305 = vmatpush1.bf16.msra.mxu0 0
      %1306 = vmatprep.subr.bf16.mxu0 0
      %1307 = vmatpush1.bf16.msra.mxu0 0
      %1308 = vmatprep.subr.bf16.mxu0 0
      %1309 = vmatpush1.bf16.msra.mxu0 0
      %1310 = vmatprep.subr.bf16.mxu0 0
      %1311 = vmatpush1.bf16.msra.mxu0 0
      %1312 = vmatprep.subr.bf16.mxu0 0
      %1313 = vmatpush1.bf16.msra.mxu0 0
      %1314 = vmatprep.subr.bf16.mxu0 0
      %1315 = vmatpush1.bf16.msra.mxu0 0
      %1316 = vmatprep.subr.bf16.mxu0 0
      %1317 = vmatpush1.bf16.msra.mxu0 0
      %1318 = vmatprep.subr.bf16.mxu0 0
      %1319 = vmatpush1.bf16.msra.mxu0 0
      %1320 = vmatprep.subr.bf16.mxu0 0
      %1321 = vmatpush1.bf16.msra.mxu0 0
      %1322 = vmatprep.subr.bf16.mxu0 0
      %1323 = vmatpush1.bf16.msra.mxu0 0
      %1324 = vmatprep.mubr.bf16.mxu0 0
      %1325 = vmatmul.mubr.bf16.gmra.mrb[0].mxu0 %v1290
      %v1326 = vpop.f32.mrb[0].mxu0
      %v1327 = vadd.f32 %v1275, %v1326
      %v1328 = vpop.f32.mrb[0].mxu0
      %v1329 = vpop.f32.mrb[0].mxu0
      %v1330 = vpop.f32.mrb[0].mxu0
      %1331 = vdwg.mxu0
      %v1332 = vmul.f32 %v1327, 0.5
      %v1333 = vmul.f32 %v1327, 0.70710677
      %v1334 = verf.f32.pop %v1333
      %v1335 = vadd.f32 %v1334, 1.0
      %v1336 = vmul.f32 %v1332, %v1335
      %v1337 = vpack.c.bf16 %v1336, %v1336
      %v1338 = vld [vmem:[%s11] sm:$0xf]
      %v1339 = vld [vmem:[%s11 + $0x4] sm:$0xf]
      %v1340 = vld [vmem:[%s11 + $0x8] sm:$0xf]
      %v1341 = vld [vmem:[%s11 + $0xc] sm:$0xf]
      %v1342 = vld [vmem:[%s11 + $0x10] sm:$0xf]
      %v1343 = vld [vmem:[%s11 + $0x14] sm:$0xf]
      %v1344 = vld [vmem:[%s11 + $0x18] sm:$0xf]
      %v1345 = vld [vmem:[%s11 + $0x1c] sm:$0xf]
      %v1346 = vld [vmem:[%s12] sm:$0x1]
      %v1348 = vlaneseq
      %v1349 = vshrl.u32 %v1348, 7
      %v1350 = vsub.s32 0, %v1349
      %v1351 = vrot.slane %v1346, %v1350
      %v1361 = vunpack.c.l.b16 %v1338
      %v1362 = vunpack.c.l.b16 %v1339
      %v1363 = vunpack.c.l.b16 %v1340
      %v1364 = vunpack.c.l.b16 %v1341
      %v1365 = vunpack.c.l.b16 %v1342
      %v1366 = vunpack.c.l.b16 %v1343
      %v1367 = vunpack.c.l.b16 %v1344
      %v1368 = vunpack.c.l.b16 %v1345
      %v1369 = vpack.c.b16 %v1362, %v1361
      %v1370 = vpack.c.b16 %v1364, %v1363
      %v1371 = vpack.c.b16 %v1366, %v1365
      %v1372 = vpack.c.b16 %v1368, %v1367
      %vm1377 = vcmask 523264
      %v1379 = vsel %vm1377, %v1337, 0
      %1381 = vmatprep.subr.bf16.mxu0 0
      %1382 = vmatpush1.bf16.msra.mxu0 %v1369
      %1383 = vmatprep.subr.bf16.mxu0 0
      %1384 = vmatpush1.bf16.msra.mxu0 %v1370
      %1385 = vmatprep.subr.bf16.mxu0 0
      %1386 = vmatpush1.bf16.msra.mxu0 %v1371
      %1387 = vmatprep.subr.bf16.mxu0 0
      %1388 = vmatpush1.bf16.msra.mxu0 %v1372
      %1389 = vmatprep.subr.bf16.mxu0 0
      %1390 = vmatpush1.bf16.msra.mxu0 0
      %1391 = vmatprep.subr.bf16.mxu0 0
      %1392 = vmatpush1.bf16.msra.mxu0 0
      %1393 = vmatprep.subr.bf16.mxu0 0
      %1394 = vmatpush1.bf16.msra.mxu0 0
      %1395 = vmatprep.subr.bf16.mxu0 0
      %1396 = vmatpush1.bf16.msra.mxu0 0
      %1397 = vmatprep.subr.bf16.mxu0 0
      %1398 = vmatpush1.bf16.msra.mxu0 0
      %1399 = vmatprep.subr.bf16.mxu0 0
      %1400 = vmatpush1.bf16.msra.mxu0 0
      %1401 = vmatprep.subr.bf16.mxu0 0
      %1402 = vmatpush1.bf16.msra.mxu0 0
      %1403 = vmatprep.subr.bf16.mxu0 0
      %1404 = vmatpush1.bf16.msra.mxu0 0
      %1405 = vmatprep.subr.bf16.mxu0 0
      %1406 = vmatpush1.bf16.msra.mxu0 0
      %1407 = vmatprep.subr.bf16.mxu0 0
      %1408 = vmatpush1.bf16.msra.mxu0 0
      %1409 = vmatprep.subr.bf16.mxu0 0
      %1410 = vmatpush1.bf16.msra.mxu0 0
      %1411 = vmatprep.subr.bf16.mxu0 0
      %1412 = vmatpush1.bf16.msra.mxu0 0
      %1413 = vmatprep.mubr.bf16.mxu0 0
      %1414 = vmatmul.mubr.bf16.gmra.mrb[0].mxu0 %v1379
      %v1415 = vpop.f32.mrb[0].mxu0
      %v1416 = vadd.f32 %v1351, %v1415
      %v1417 = vpop.f32.mrb[0].mxu0
      %v1418 = vpop.f32.mrb[0].mxu0
      %v1419 = vpop.f32.mrb[0].mxu0
      %1420 = vdwg.mxu0
      %v1421 = vadd.f32 %v1235, %v1416
      %1422 = vst.msk [vmem:[%s469] sm:$0x1f] %vm478, %v1421
      %p1423 = scmp.lt.s32.totalorder %s26, 1
      %s1424 = scalar_select %p1423, %s26, 1
      %s1425 = smul.addr %s1424, 8
      %s1426 = scalar_lea.vmem %s13, %s1425
      %p1427 = scmp.lt.s32.totalorder %s26, 1
      %s1428 = scalar_select %p1427, %s26, 1
      %s1429 = smul.addr %s1428, 8
      %s1430 = scalar_lea.vmem %s14, %s1429
      // Predicated region
      $region73: #{vit_forward.5} parent=71 // pred_check
        %p1431 = pneg %p322
      $region74: #{vit_forward.5} parent=71 // pred_check_branch
        %1433 = sbr.rel (%p1431) target = $region76
      $region75: #{vit_forward.5} parent=71 // pred_region
        _
      $region76: #{vit_forward.5} parent=71 // pred_fallthru
        _
      // Predicated region
      $region77: #{vit_forward.5} parent=71 // pred_check
        %p1434 = pneg %p348
      $region78: #{vit_forward.5} parent=71 // pred_check_branch
        %1436 = sbr.rel (%p1434) target = $region80
      $region79: #{vit_forward.5} parent=71 // pred_region
        _
      $region80: #{vit_forward.5} parent=71 // pred_fallthru
        _
    $region72: #{vit_forward.5} parent=5 // pred_fallthru
      _
    %p1437 = scmp.le.s32.totalorder 2, %s21
    // Predicated region
    $region81: #{vit_forward.5} parent=5 // pred_check
      %p1438 = pneg %p1437
    $region82: #{vit_forward.5} parent=5 // pred_check_branch
      %1440 = sbr.rel (%p1438) target = $region84
    $region83: #{vit_forward.5} parent=5 // pred_region
      %s1441 = ssub.s32 %s21, 2
      // Predicated region
      $region85: #{vit_forward.5} parent=83 // pred_check
        %p1442 = pneg %p328
      $region86: #{vit_forward.5} parent=83 // pred_check_branch
        %1444 = sbr.rel (%p1442) target = $region88
      $region87: #{vit_forward.5} parent=83 // pred_region
        %p1445 = scmp.lt.s32.totalorder %s27, 1
        %s1446 = scalar_select %p1445, %s27, 1
        %s1447 = smul.addr %s1446, 8
        %s1448 = scalar_lea.vmem %s13, %s1447
      $region88: #{vit_forward.5} parent=83 // pred_fallthru
        _
      // Predicated region
      $region89: #{vit_forward.5} parent=83 // pred_check
        %p1449 = pneg %p354
      $region90: #{vit_forward.5} parent=83 // pred_check_branch
        %1451 = sbr.rel (%p1449) target = $region92
      $region91: #{vit_forward.5} parent=83 // pred_region
        %p1452 = scmp.lt.s32.totalorder %s27, 1
        %s1453 = scalar_select %p1452, %s27, 1
        %s1454 = smul.addr %s1453, 8
        %s1455 = scalar_lea.vmem %s14, %s1454
      $region92: #{vit_forward.5} parent=83 // pred_fallthru
        _
    $region84: #{vit_forward.5} parent=5 // pred_fallthru
      _
  $region6: #{vit_forward.5} parent=0 // loop_footer
    %s25 = sadd.s32 1, %s21
  $region7: #{vit_forward.5} parent=0 // loop_footer_branch
    %20 = sbr.rel target = $region3
  $region8: #{vit_forward.5} parent=0 // loop_exit
    _

</llo_original>
